<compile_context>
chip_gen: v6e
topology: v6e:2x2x1
jax: 0.10.0
libtpu: 0.0.40
codegen_flags: <defaults>
</compile_context>

<pallas_src>
import numpy as np
import jax
import jax.numpy as jnp
from jax.experimental import pallas as pl
from jax.experimental.pallas import tpu as pltpu


# ----------------------------------------------------------------------------
# Parameter construction (deterministic, pure numpy) -- mirrors Signal2SH.__init__
# ----------------------------------------------------------------------------
def _cart2sph(x, y, z):
    r = np.sqrt(x * x + y * y + z * z)
    phi = np.arctan2(y, x)                                           # azimuth
    theta = np.arccos(np.clip(z / np.maximum(r, 1e-12), -1.0, 1.0))  # polar
    return phi, theta, r


def _assoc_legendre(m, l, x):
    """P_l^m(x) with Condon-Shortley phase (scipy convention)."""
    pmm = np.ones_like(x, dtype=np.float64)
    if m > 0:
        somx2 = np.sqrt(np.maximum(1.0 - x * x, 0.0))
        fact = 1.0
        for _ in range(m):
            pmm = -pmm * fact * somx2
            fact += 2.0
    if l == m:
        return pmm
    pmmp1 = x * (2.0 * m + 1.0) * pmm
    if l == m + 1:
        return pmmp1
    pll = pmmp1
    for ll in range(m + 2, l + 1):
        pll = ((2.0 * ll - 1.0) * x * pmmp1 - (ll + m - 1.0) * pmm) / (ll - m)
        pmm, pmmp1 = pmmp1, pll
    return pll


def _sph_harm(m, l, phi, theta):
    """Complex spherical harmonic, scipy convention: sph_harm(m, l, azimuth, polar)."""
    import math
    norm = math.sqrt((2 * l + 1) / (4.0 * np.pi)
                     * math.factorial(l - m) / math.factorial(l + m))
    plm = _assoc_legendre(m, l, np.cos(theta))
    return norm * plm * np.exp(1j * m * phi)


def build_signal2sh_matrix(sh_order, gradients, lb_lambda=0.006):
    """Returns the TRANSPOSED fit matrix, shape (num_coefficients, num_gradients)."""
    num_gradients = gradients.shape[0]
    num_coefficients = int((sh_order + 1) * (sh_order / 2 + 1))
    b = np.zeros((num_gradients, num_coefficients), dtype=np.float64)
    l = np.zeros((num_coefficients, num_coefficients), dtype=np.float64)
    for id_gradient in range(num_gradients):
        id_column = 0
        for id_order in range(0, sh_order + 1, 2):
            for id_degree in range(-id_order, id_order + 1):
                gphi, gtheta, _ = _cart2sph(gradients[id_gradient, 0],
                                            gradients[id_gradient, 1],
                                            gradients[id_gradient, 2])
                y = _sph_harm(abs(id_degree), id_order, gphi, gtheta)
                if id_degree < 0:
                    b[id_gradient, id_column] = np.real(y) * np.sqrt(2)
                elif id_degree == 0:
                    b[id_gradient, id_column] = np.real(y)
                else:
                    b[id_gradient, id_column] = np.imag(y) * np.sqrt(2)
                l[id_column, id_column] = lb_lambda * id_order ** 2 * (id_order + 1) ** 2
                id_column += 1
    b_inv = np.linalg.pinv(b.T @ b + l)
    signal2sh_mat = (b_inv @ b.T).T                 # (num_gradients, num_coefficients)
    matT = np.ascontiguousarray(signal2sh_mat.T)    # (num_coefficients, num_gradients)
    return np.asarray(matT, dtype=np.float32), num_gradients, num_coefficients


def _fibonacci_sphere(n):
    """Deterministic unit gradient directions."""
    i = np.arange(n, dtype=np.float64)
    phi = np.pi * (3.0 - np.sqrt(5.0)) * i
    z = 1.0 - 2.0 * (i + 0.5) / n
    r = np.sqrt(np.maximum(1.0 - z * z, 0.0))
    return np.stack([r * np.cos(phi), r * np.sin(phi), z], axis=1)


# ----------------------------------------------------------------------------
# Per-generation tile / VMEM budget
# ----------------------------------------------------------------------------
def _physical_vmem_bytes():
    try:
        info = pltpu.get_tpu_info()
        v = getattr(info, "vmem_capacity_bytes", None)
        if v:
            return int(v)
    except Exception:
        pass
    return 64 * 1024 * 1024  # conservative (v7x-sized) fallback


def _pick_config(G, C):
    phys = _physical_vmem_bytes()
    vmem_limit = min(int(phys * 0.75), 96 * 1024 * 1024)
    # f32 in + out per voxel column, double-buffered.
    per_voxel = 2 * 4 * (G + C)
    budget = int(vmem_limit * 0.55)
    tile_v_max = max(512, (budget // per_voxel) // 128 * 128)
    return tile_v_max, vmem_limit


# ----------------------------------------------------------------------------
# Pallas kernels
# ----------------------------------------------------------------------------
def _s2sh_kernel(matT_ref, x_ref, o_ref):
    # matT: (C, G), x: (G, tile_v), o: (C, tile_v)  -- lane-dense output
    o_ref[...] = jnp.dot(
        matT_ref[...], x_ref[...],
        preferred_element_type=jnp.float32,
        precision=jax.lax.Precision.HIGHEST,
    ).astype(o_ref.dtype)


def _s2sh_kernel_rows(matT_ref, x_ref, o_ref):
    # matT: (C, G), x: (NB, G, V), o: (NB, C, V) -- small-V path, NB rows per step
    w = matT_ref[...]
    nb = x_ref.shape[0]
    for b in range(nb):  # static unrolled loop; NB is small
        o_ref[b, :, :] = jnp.dot(
            w, x_ref[b, :, :],
            preferred_element_type=jnp.float32,
            precision=jax.lax.Precision.HIGHEST,
        ).astype(o_ref.dtype)


# ----------------------------------------------------------------------------
# pallas_call wrapper
# ----------------------------------------------------------------------------
def _s2sh_matmul(x3, matT, *, tile_v_max=None, vmem_limit_bytes=None):
    """x3: (BS, G, V) float32, matT: (C, G) float32 -> (BS, C, V) float32."""
    BS, G, V = x3.shape
    C = matT.shape[0]

    auto_tile, auto_vmem = _pick_config(G, C)
    if tile_v_max is None:
        tile_v_max = auto_tile
    if vmem_limit_bytes is None:
        vmem_limit_bytes = auto_vmem

    cost = pl.CostEstimate(
        flops=2 * BS * C * G * V,
        transcendentals=0,
        bytes_accessed=4 * BS * (G + C) * V + 4 * C * G,
    )

    if V > tile_v_max:
        # ---- Large-V path: tile the voxel (lane) axis, flatten grid for megacore.
        n_v = (V + tile_v_max - 1) // tile_v_max
        # Balanced tile: avoid a nearly-empty ragged last block.
        tile_v = (((V + n_v - 1) // n_v) + 127) // 128 * 128
        n_v = (V + tile_v - 1) // tile_v

        return pl.pallas_call(
            _s2sh_kernel,
            out_shape=jax.ShapeDtypeStruct((BS, C, V), jnp.float32),
            grid=(BS * n_v,),
            in_specs=[
                # Tiny weight, VMEM-resident for the whole grid.
                pl.BlockSpec((C, G), lambda i: (0, 0)),
                pl.BlockSpec((None, G, tile_v), lambda i: (i // n_v, 0, i % n_v)),
            ],
            out_specs=pl.BlockSpec((None, C, tile_v), lambda i: (i // n_v, 0, i % n_v)),
            compiler_params=pltpu.CompilerParams(
                dimension_semantics=("parallel",),
                vmem_limit_bytes=vmem_limit_bytes,
            ),
            cost_estimate=cost,
        )(matT, x3)

    # ---- Small-V path: pack NB batch/shell rows per grid step.
    row_bytes = 4 * (G + C) * V
    nb_cap = max(1, (8 * 1024 * 1024) // max(row_bytes, 1))   # ~8 MB of rows per block
    NB = max(1, min(BS, nb_cap))
    if BS >= 2:
        NB = min(NB, (BS + 1) // 2)        # keep >= 2 blocks for v7x megacore
    while BS % NB != 0:                    # avoid ragged batch block
        NB -= 1
    n_b = BS // NB

    return pl.pallas_call(
        _s2sh_kernel_rows,
        out_shape=jax.ShapeDtypeStruct((BS, C, V), jnp.float32),
        grid=(n_b,),
        in_specs=[
            pl.BlockSpec((C, G), lambda i: (0, 0)),
            pl.BlockSpec((NB, G, V), lambda i: (i, 0, 0)),
        ],
        out_specs=pl.BlockSpec((NB, C, V), lambda i: (i, 0, 0)),
        compiler_params=pltpu.CompilerParams(
            dimension_semantics=("parallel",),
            vmem_limit_bytes=vmem_limit_bytes,
        ),
        cost_estimate=cost,
    )(matT, x3)


# ----------------------------------------------------------------------------
# Forward wrapper mirroring Signal2SH.forward (no transposes, no padding copies)
# ----------------------------------------------------------------------------
def signal2sh_forward(x_in, signal2sh_matT, num_gradients, *,
                      tile_v_max=None, vmem_limit_bytes=None):
    """x_in: (B, shells*num_gradients, X, Y, Z) float32
       signal2sh_matT: (num_coefficients, num_gradients) float32
       -> (B, shells*num_coefficients, X, Y, Z) float32."""
    B, CH, X, Y, Z = x_in.shape
    G = num_gradients
    assert CH % G == 0, "channel dim must be shells * num_gradients"
    S = CH // G
    C = signal2sh_matT.shape[0]
    V = X * Y * Z

    # Contiguous reshape only (no data movement): (B, S*G, X, Y, Z) -> (B*S, G, V)
    x3 = x_in.reshape(B * S, G, V)
    y3 = _s2sh_matmul(x3, signal2sh_matT,
                      tile_v_max=tile_v_max, vmem_limit_bytes=vmem_limit_bytes)
    # Contiguous reshape only: (B*S, C, V) -> (B, S*C, X, Y, Z)
    return y3.reshape(B, S * C, X, Y, Z)


# ----------------------------------------------------------------------------
def _reference(x_in, matT, G, C, B, S, X, Y, Z):
    # Pure-JAX reference following the original torch layout (reshape/permute/matmul).
    x_r = jnp.transpose(x_in.reshape(B, S, G, X, Y, Z), (0, 1, 3, 4, 5, 2))
    y_r = jnp.einsum("bsxyzg,cg->bsxyzc", x_r, matT,
                     precision=jax.lax.Precision.HIGHEST)
    return jnp.transpose(y_r, (0, 1, 5, 2, 3, 4)).reshape(B, S * C, X, Y, Z)


if __name__ == "__main__":
    sh_order = 4
    num_gradients = 30

    gradients = _fibonacci_sphere(num_gradients)
    matT_np, G, C = build_signal2sh_matrix(sh_order, gradients)
    matT = jnp.asarray(matT_np)          # (C, G), built already transposed
    key = jax.random.PRNGKey(0)

    # --- Test 1: small-V batched path (B=2, shells=2, 8^3 volume) ---------------
    B, shells, X, Y, Z = 2, 2, 8, 8, 8
    k1, k2 = jax.random.split(key)
    x1 = jax.random.normal(k1, (B, shells * G, X, Y, Z), dtype=jnp.float32)
    y1 = jax.block_until_ready(signal2sh_forward(x1, matT, G))
    y1_ref = _reference(x1, matT, G, C, B, shells, X, Y, Z)
    assert y1.shape == (B, shells * C, X, Y, Z)
    np.testing.assert_allclose(np.asarray(y1), np.asarray(y1_ref), rtol=1e-4, atol=1e-5)

    # --- Test 2: large-V tiled path with a ragged (non-128-multiple) voxel tail --
    # Force the voxel-tiling path by overriding tile_v_max; V = 5*7*9 = 315.
    B2, shells2, X2, Y2, Z2 = 2, 1, 5, 7, 9
    x2 = jax.random.normal(k2, (B2, shells2 * G, X2, Y2, Z2), dtype=jnp.float32)
    y2 = jax.block_until_ready(signal2sh_forward(x2, matT, G, tile_v_max=128))
    y2_ref = _reference(x2, matT, G, C, B2, shells2, X2, Y2, Z2)
    assert y2.shape == (B2, shells2 * C, X2, Y2, Z2)
    np.testing.assert_allclose(np.asarray(y2), np.asarray(y2_ref), rtol=1e-4, atol=1e-5)

    print("KERNEL_OK")
</pallas_src>

<mosaic_0001>
module attributes {stable_mosaic.version = 11 : i64} {
  func.func @_s2sh_kernel_rows(%arg0: i32, %arg1: memref<15x30xf32, #tpu.memory_space<vmem>>, %arg2: memref<2x30x512xf32, #tpu.memory_space<vmem>>, %arg3: memref<2x15x512xf32, #tpu.memory_space<vmem>>) attributes {dimension_semantics = [#tpu.dimension_semantics<parallel>], iteration_bounds = array<i64: 2>, scalar_prefetch = 0 : i64, scratch_operands = 0 : i64, tpu.core_type = #tpu.core_type<tc>, window_params = [{pipeline_mode = #tpu.pipeline_mode<synchronous>, transform_indices = @transform_0, window_bounds = array<i64: 15, 30>}, {transform_indices = @transform_1, window_bounds = array<i64: 2, 30, 512>}, {transform_indices = @transform_2, window_bounds = array<i64: 2, 15, 512>}]} {
    %c0 = arith.constant 0 : index
    %c0_0 = arith.constant 0 : index
    %0 = vector.load %arg1[%c0, %c0_0] : memref<15x30xf32, #tpu.memory_space<vmem>>, vector<15x30xf32>
    %c0_1 = arith.constant 0 : index
    %c0_2 = arith.constant 0 : index
    %c0_3 = arith.constant 0 : index
    %1 = vector.load %arg2[%c0_1, %c0_2, %c0_3] : memref<2x30x512xf32, #tpu.memory_space<vmem>>, vector<1x30x512xf32>
    %2 = vector.shape_cast %1 : vector<1x30x512xf32> to vector<30x512xf32>
    %cst = arith.constant dense<0.000000e+00> : vector<15x512xf32>
    %3 = tpu.matmul %0, %2, %cst {dimension_numbers = #tpu.dot_dimension_numbers<[1], [0], [0], [1], [0, 0, 1, 1], [], []>, precision = #tpu.contract_precision<fp32>} : vector<15x30xf32>, vector<30x512xf32>, vector<15x512xf32> -> vector<15x512xf32>
    %c0_4 = arith.constant 0 : index
    %c0_5 = arith.constant 0 : index
    %c0_6 = arith.constant 0 : index
    %4 = vector.load %arg3[%c0_4, %c0_5, %c0_6] : memref<2x15x512xf32, #tpu.memory_space<vmem>>, vector<1x15x512xf32>
    %5 = vector.shape_cast %4 : vector<1x15x512xf32> to vector<15x512xf32>
    %6 = vector.shape_cast %3 : vector<15x512xf32> to vector<1x15x512xf32>
    tpu.vector_store %arg3[%c0_4, %c0_5, %c0_6], %6 {strides = array<i32>} : memref<2x15x512xf32, #tpu.memory_space<vmem>>, vector<1x15x512xf32>,
    %c1 = arith.constant 1 : index
    %c0_7 = arith.constant 0 : index
    %c0_8 = arith.constant 0 : index
    %7 = vector.load %arg2[%c1, %c0_7, %c0_8] : memref<2x30x512xf32, #tpu.memory_space<vmem>>, vector<1x30x512xf32>
    %8 = vector.shape_cast %7 : vector<1x30x512xf32> to vector<30x512xf32>
    %cst_9 = arith.constant dense<0.000000e+00> : vector<15x512xf32>
    %9 = tpu.matmul %0, %8, %cst_9 {dimension_numbers = #tpu.dot_dimension_numbers<[1], [0], [0], [1], [0, 0, 1, 1], [], []>, precision = #tpu.contract_precision<fp32>} : vector<15x30xf32>, vector<30x512xf32>, vector<15x512xf32> -> vector<15x512xf32>
    %c1_10 = arith.constant 1 : index
    %c0_11 = arith.constant 0 : index
    %c0_12 = arith.constant 0 : index
    %10 = vector.load %arg3[%c1_10, %c0_11, %c0_12] : memref<2x15x512xf32, #tpu.memory_space<vmem>>, vector<1x15x512xf32>
    %11 = vector.shape_cast %10 : vector<1x15x512xf32> to vector<15x512xf32>
    %12 = vector.shape_cast %9 : vector<15x512xf32> to vector<1x15x512xf32>
    tpu.vector_store %arg3[%c1_10, %c0_11, %c0_12], %12 {strides = array<i32>} : memref<2x15x512xf32, #tpu.memory_space<vmem>>, vector<1x15x512xf32>,
    return
  }
  func.func @transform_0(%arg0: i32) -> (i32, i32) {
    %c0_i32 = arith.constant 0 : i32
    %c0_i32_0 = arith.constant 0 : i32
    %c0_i32_1 = arith.constant 0 : i32
    return %c0_i32, %c0_i32_0 : i32, i32
  }
  func.func @transform_1(%arg0: i32) -> (i32, i32, i32) {
    %c0_i32 = arith.constant 0 : i32
    %c0_i32_0 = arith.constant 0 : i32
    %c0_i32_1 = arith.constant 0 : i32
    return %arg0, %c0_i32, %c0_i32_0 : i32, i32, i32
  }
  func.func @transform_2(%arg0: i32) -> (i32, i32, i32) {
    %c0_i32 = arith.constant 0 : i32
    %c0_i32_0 = arith.constant 0 : i32
    %c0_i32_1 = arith.constant 0 : i32
    return %arg0, %c0_i32, %c0_i32_0 : i32, i32, i32
  }
}

</mosaic_0001>

<llo_original>
// kernel: tpu_custom_call.1
$region0: #{tpu_custom_call.1}
  #allocation0 [shape = 'u32[]', space=smem, size = 0x4, offset = 0x4, fixed_abs, tag = 'smem constant byte address 0x4 - core index']
  #allocation1 [shape = 'u32[144,128]{1,0:T(1,128)}', space=vmem, size = 0x12000, scoped, tag = 'internal scratch']
  %s0 = inlined_call_operand.vmem [shape: f32[15,30], index: 0, kind: input, shape index: {}]
  %s1 = inlined_call_operand.vmem [shape: f32[4,30,512], index: 1, kind: input, shape index: {}]
  %s2 = inlined_call_operand.vmem [shape: f32[4,15,512], index: 2, kind: output, shape index: {}]
  %s3 = sld [smem:[#allocation0]]
  $region41: #{tpu_custom_call.1} parent=0
    _
  %s5 = ssub.s32 1, %s3
  %s6 = scalar_select 0, %s5, %s3
  loop: start=0, step=1, limit=4
  $region2: #{tpu_custom_call.1} parent=0 // loop_pre_header
    _
  $region3: #{tpu_custom_call.1} parent=0 // loop_header
    %s8 = sphi 0, %s12
    %p9 = scmp.ge.s32.totalorder %s8, 4
    %s16 = sphi 0, %s16
    %s18 = sphi 0, %s16
    %s19 = sphi 0, %s18
    %s33 = sphi 0, %s19
    %s39 = sphi 0, %s41
    %s42 = sphi 0, %s39
    %s43 = sphi 0, %s42
    %s59 = sphi 0, %s43
    %s65 = sphi 0, %s67
    %s68 = sphi 0, %s65
    %s69 = sphi 0, %s68
    %s85 = sphi 0, %s69
  $region4: #{tpu_custom_call.1} parent=0 // loop_header_branch
    %11 = sbr.rel (%p9) target = $region8
  $region5: #{tpu_custom_call.1} parent=0 // loop_body
    %s13 = ssub.s32 %s8, 1
    %s14 = ssub.s32 %s8, 2
    %s15 = sadd.s32 %s8, 1
    %s17 = sadd.s32 %s16, 1
    %p20 = scmp.eq.s32.totalorder %s8, 1
    %p21 = scmp.ne.s32.totalorder %s16, %s18
    %p22 = scmp.eq.s32.totalorder %s8, 0
    %p23 = por %p21, %p22
    %p24 = scmp.ne.s32.totalorder %s16, %s18
    %p25 = scmp.eq.s32.totalorder %s13, 1
    %p26 = por %p24, %p25
    %p27 = scmp.ne.s32.totalorder %s18, %s19
    %p28 = scmp.eq.s32.totalorder %s13, 0
    %p29 = por %p27, %p28
    %p30 = scmp.ne.s32.totalorder %s18, %s19
    %p31 = scmp.eq.s32.totalorder %s14, 1
    %p32 = por %p30, %p31
    %p34 = scmp.ne.s32.totalorder %s19, %s33
    %p35 = scmp.eq.s32.totalorder %s14, 0
    %p36 = por %p34, %p35
    %s37 = ssub.s32 %s8, %s15
    %p38 = scmp.eq.s32.totalorder %s37, 0
    %s40 = sadd.s32 %s39, 1
    %s41 = scalar_select %p38, %s39, %s40
    %p44 = pneg %p38
    %p45 = scmp.eq.s32.totalorder %s8, 1
    %p46 = por %p44, %p45
    %p47 = scmp.ne.s32.totalorder %s39, %s42
    %p48 = scmp.eq.s32.totalorder %s8, 0
    %p49 = por %p47, %p48
    %p50 = scmp.ne.s32.totalorder %s39, %s42
    %p51 = scmp.eq.s32.totalorder %s13, 1
    %p52 = por %p50, %p51
    %p53 = scmp.ne.s32.totalorder %s42, %s43
    %p54 = scmp.eq.s32.totalorder %s13, 0
    %p55 = por %p53, %p54
    %p56 = scmp.ne.s32.totalorder %s42, %s43
    %p57 = scmp.eq.s32.totalorder %s14, 1
    %p58 = por %p56, %p57
    %p60 = scmp.ne.s32.totalorder %s43, %s59
    %p61 = scmp.eq.s32.totalorder %s14, 0
    %p62 = por %p60, %p61
    %s63 = ssub.s32 %s8, %s15
    %p64 = scmp.eq.s32.totalorder %s63, 0
    %s66 = sadd.s32 %s65, 1
    %s67 = scalar_select %p64, %s65, %s66
    %p70 = pneg %p64
    %p71 = scmp.eq.s32.totalorder %s8, 1
    %p72 = por %p70, %p71
    %p73 = scmp.ne.s32.totalorder %s65, %s68
    %p74 = scmp.eq.s32.totalorder %s8, 0
    %p75 = por %p73, %p74
    %p76 = scmp.ne.s32.totalorder %s65, %s68
    %p77 = scmp.eq.s32.totalorder %s13, 1
    %p78 = por %p76, %p77
    %p79 = scmp.ne.s32.totalorder %s68, %s69
    %p80 = scmp.eq.s32.totalorder %s13, 0
    %p81 = por %p79, %p80
    %p82 = scmp.ne.s32.totalorder %s68, %s69
    %p83 = scmp.eq.s32.totalorder %s14, 1
    %p84 = por %p82, %p83
    %p86 = scmp.ne.s32.totalorder %s69, %s85
    %p87 = scmp.eq.s32.totalorder %s14, 0
    %p88 = por %p86, %p87
    %p89 = scmp.le.s32.totalorder 1, %s8
    %p90 = scmp.lt.s32.totalorder %s8, 3
    %p91 = pnand %p89, %p90
    %p92 = pneg %p91
    // Predicated region
    $region9: #{tpu_custom_call.1} parent=5 // pred_check
      _
    $region10: #{tpu_custom_call.1} parent=5 // pred_check_branch
      %94 = sbr.rel (%p91) target = $region12
    $region11: #{tpu_custom_call.1} parent=5 // pred_region
      %s95 = ssub.s32 %s8, 1
      // Predicated region
      $region13: #{tpu_custom_call.1} parent=11 // pred_check
        %p96 = pneg %p29
      $region14: #{tpu_custom_call.1} parent=11 // pred_check_branch
        %98 = sbr.rel (%p96) target = $region16
      $region15: #{tpu_custom_call.1} parent=11 // pred_region
        _
      $region16: #{tpu_custom_call.1} parent=11 // pred_fallthru
        _
    $region12: #{tpu_custom_call.1} parent=5 // pred_fallthru
      _
    %p99 = scmp.lt.s32.totalorder %s8, 2
    // Predicated region
    $region17: #{tpu_custom_call.1} parent=5 // pred_check
      %p100 = pneg %p99
    $region18: #{tpu_custom_call.1} parent=5 // pred_check_branch
      %102 = sbr.rel (%p100) target = $region20
    $region19: #{tpu_custom_call.1} parent=5 // pred_region
      // Predicated region
      $region21: #{tpu_custom_call.1} parent=19 // pred_check
        %p103 = pneg %p49
      $region22: #{tpu_custom_call.1} parent=19 // pred_check_branch
        %105 = sbr.rel (%p103) target = $region24
      $region23: #{tpu_custom_call.1} parent=19 // pred_region
        %s106 = smul.u32 2, %s8
        %p107 = scmp.lt.s32.totalorder %s106, 3
        %s108 = scalar_select %p107, %s106, 3
        %s109 = smul.addr %s108, 16
        %s110 = smul.addr %s109, 8
        %s111 = scalar_lea.vmem %s1, %s110
        %s112 = smul.u32 2, %s8
      $region24: #{tpu_custom_call.1} parent=19 // pred_fallthru
        _
    $region20: #{tpu_custom_call.1} parent=5 // pred_fallthru
      _
    %p113 = scmp.le.s32.totalorder 1, %s8
    %p114 = scmp.lt.s32.totalorder %s8, 3
    %p115 = pnand %p113, %p114
    %p116 = pneg %p115
    // Predicated region
    $region25: #{tpu_custom_call.1} parent=5 // pred_check
      _
    $region26: #{tpu_custom_call.1} parent=5 // pred_check_branch
      %118 = sbr.rel (%p115) target = $region28
    $region27: #{tpu_custom_call.1} parent=5 // pred_region
      %s119 = ssub.s32 %s8, 1
      %p120 = pneg %p29
      %p121 = pneg %p26
      %s122 = smul.u32 2, %s13
      %p123 = scmp.lt.s32.totalorder %s122, 3
      %s124 = scalar_select %p123, %s122, 3
      %s125 = smul.addr %s124, 16
      %s126 = smul.addr %s125, 8
      %s127 = scalar_lea.vmem %s1, %s126
      %p128 = pneg %p55
      %p129 = pneg %p52
      %p130 = pneg %p81
      %p131 = pneg %p78
      %s132 = smul.u32 2, %s13
      %p133 = scmp.lt.s32.totalorder %s132, 3
      %s134 = scalar_select %p133, %s132, 3
      %s135 = smul.addr %s134, 8
      %s136 = smul.addr %s135, 8
      %s137 = scalar_lea.vmem %s2, %s136
      %s138 = smul.u32 2, %s13
      %p139 = scmp.lt.s32.totalorder %s138, 3
      %s140 = scalar_select %p139, %s138, 3
      %s141 = smul.addr %s140, 16
      %s142 = smul.addr %s141, 8
      %s143 = scalar_lea.vmem %s1, %s142
      %s144 = smul.u32 2, %s13
      %s145 = smul.u32 2, %s13
      %p146 = scmp.lt.s32.totalorder %s145, 3
      %s147 = scalar_select %p146, %s145, 3
      %s148 = smul.addr %s147, 8
      %s149 = smul.addr %s148, 8
      %s150 = scalar_lea.vmem %s2, %s149
      %s151 = smul.u32 2, %s13
      %v152 = vld [vmem:[%s0] sm:$0xff]
      %v153 = vld [vmem:[%s0 + $0x8] sm:$0x7f]
      %v154 = vld [vmem:[%s143] sm:$0xff]
      %v155 = vld [vmem:[%s143 + $0x8] sm:$0xff]
      %v156 = vld [vmem:[%s143 + $0x10] sm:$0xff]
      %v157 = vld [vmem:[%s143 + $0x18] sm:$0xff]
      %v158 = vld [vmem:[%s143 + $0x20] sm:$0xff]
      %v159 = vld [vmem:[%s143 + $0x28] sm:$0xff]
      %v160 = vld [vmem:[%s143 + $0x30] sm:$0xff]
      %v161 = vld [vmem:[%s143 + $0x38] sm:$0xff]
      %v162 = vld [vmem:[%s143 + $0x40] sm:$0xff]
      %v163 = vld [vmem:[%s143 + $0x48] sm:$0xff]
      %v164 = vld [vmem:[%s143 + $0x50] sm:$0xff]
      %v165 = vld [vmem:[%s143 + $0x58] sm:$0xff]
      %v166 = vld [vmem:[%s143 + $0x60] sm:$0x3f]
      %v167 = vld [vmem:[%s143 + $0x68] sm:$0x3f]
      %v168 = vld [vmem:[%s143 + $0x70] sm:$0x3f]
      %v169 = vld [vmem:[%s143 + $0x78] sm:$0x3f]
      %vm170 = vcmask 244736
      %v172 = vsel %vm170, %v152, 0
      %v175 = vsel %vm170, %v153, 0
      %vm177 = vcmask 1045504
      %v179 = vsel %vm177, %v166, 0
      %v182 = vsel %vm177, %v167, 0
      %v185 = vsel %vm177, %v168, 0
      %v188 = vsel %vm177, %v169, 0
      %190 = vmatprep.subr.mxu0 0.0
      %191 = vmatpush1.msra.mxu0 0.0
      %192 = vmatprep.subr.mxu0 0.0
      %193 = vmatpush1.msra.mxu0 0.0
      %194 = vmatprep.subr.mxu0 0.0
      %195 = vmatpush1.msra.mxu0 0.0
      %196 = vmatprep.subr.mxu0 0.0
      %197 = vmatpush1.msra.mxu0 0.0
      %198 = vmatprep.subr.mxu0 0.0
      %199 = vmatpush1.msra.mxu0 0.0
      %200 = vmatprep.subr.mxu0 0.0
      %201 = vmatpush1.msra.mxu0 0.0
      %202 = vmatprep.subr.mxu0 0.0
      %203 = vmatpush1.msra.mxu0 0.0
      %204 = vmatprep.subr.mxu0 0.0
      %205 = vmatpush1.msra.mxu0 0.0
      %206 = vmatprep.subr.mxu0 0.0
      %207 = vmatpush1.msra.mxu0 0.0
      %208 = vmatprep.subr.mxu0 0.0
      %209 = vmatpush1.msra.mxu0 0.0
      %210 = vmatprep.subr.mxu0 0.0
      %211 = vmatpush1.msra.mxu0 0.0
      %212 = vmatprep.subr.mxu0 0.0
      %213 = vmatpush1.msra.mxu0 0.0
      %v214 = vand.u32 %v182, 4294901760
      %215 = vmatprep.subr.mxu0 %v214
      %v216 = vand.u32 %v179, 4294901760
      %217 = vmatpush1.msra.mxu0 %v216
      %v218 = vand.u32 %v163, 4294901760
      %219 = vmatprep.subr.mxu0 %v218
      %v220 = vand.u32 %v162, 4294901760
      %221 = vmatpush1.msra.mxu0 %v220
      %v222 = vand.u32 %v159, 4294901760
      %223 = vmatprep.subr.mxu0 %v222
      %v224 = vand.u32 %v158, 4294901760
      %225 = vmatpush1.msra.mxu0 %v224
      %v226 = vand.u32 %v155, 4294901760
      %227 = vmatprep.subr.mxu0 %v226
      %v228 = vand.u32 %v154, 4294901760
      %229 = vmatpush1.msra.mxu0 %v228
      %230 = vmatprep.subr.mxu0 0.0
      %231 = vmatpush2.msra.mxu0 0.0
      %232 = vmatprep.subr.mxu0 0.0
      %233 = vmatpush2.msra.mxu0 0.0
      %234 = vmatprep.subr.mxu0 0.0
      %235 = vmatpush2.msra.mxu0 0.0
      %236 = vmatprep.subr.mxu0 0.0
      %237 = vmatpush2.msra.mxu0 0.0
      %238 = vmatprep.subr.mxu0 0.0
      %239 = vmatpush2.msra.mxu0 0.0
      %240 = vmatprep.subr.mxu0 0.0
      %241 = vmatpush2.msra.mxu0 0.0
      %242 = vmatprep.subr.mxu0 0.0
      %243 = vmatpush2.msra.mxu0 0.0
      %244 = vmatprep.subr.mxu0 0.0
      %245 = vmatpush2.msra.mxu0 0.0
      %246 = vmatprep.subr.mxu0 0.0
      %247 = vmatpush2.msra.mxu0 0.0
      %248 = vmatprep.subr.mxu0 0.0
      %249 = vmatpush2.msra.mxu0 0.0
      %250 = vmatprep.subr.mxu0 0.0
      %251 = vmatpush2.msra.mxu0 0.0
      %252 = vmatprep.subr.mxu0 0.0
      %253 = vmatpush2.msra.mxu0 0.0
      %254 = vmatprep.subr.mxu0 0.0
      %255 = vmatpush2.msra.mxu0 0.0
      %256 = vmatprep.subr.mxu0 0.0
      %257 = vmatpush2.msra.mxu0 0.0
      %258 = vmatprep.subr.mxu0 0.0
      %259 = vmatpush2.msra.mxu0 0.0
      %260 = vmatprep.subr.mxu0 0.0
      %261 = vmatpush2.msra.mxu0 0.0
      %262 = vmatprep.mubr.f32.mxu0 0.0
      %v263 = vand.u32 %v172, 4294901760
      %v264 = vsub.f32 %v172, %v263
      %v265 = vand.u32 %v264, 4294901760
      %v266 = vsub.f32 %v264, %v265
      %v267 = vand.u32 %v266, 4294901760
      %268 = vmatmul.mubr.f32.gmra.mxu0 %v267
      %v269 = vpop.f32.mrf.mxu0
      %v270 = vadd.f32 0.0, %v269
      %v271 = vpop.f32.mrf.mxu0
      %v272 = vadd.f32 0.0, %v271
      %273 = vmatprep.mubr.f32.mxu0 0.0
      %v274 = vand.u32 %v175, 4294901760
      %v275 = vsub.f32 %v175, %v274
      %v276 = vand.u32 %v275, 4294901760
      %v277 = vsub.f32 %v275, %v276
      %v278 = vand.u32 %v277, 4294901760
      %279 = vmatmul.mubr.f32.gmra.mxu0 %v278
      %v280 = vpop.f32.mrf.mxu0
      %v281 = vadd.f32 0.0, %v280
      %v282 = vpop.f32.mrf.mxu0
      %v283 = vadd.f32 0.0, %v282
      %284 = vdwg.mxu0
      %285 = vmatprep.subr.mxu0 0.0
      %286 = vmatpush1.msra.mxu0 0.0
      %287 = vmatprep.subr.mxu0 0.0
      %288 = vmatpush1.msra.mxu0 0.0
      %289 = vmatprep.subr.mxu0 0.0
      %290 = vmatpush1.msra.mxu0 0.0
      %291 = vmatprep.subr.mxu0 0.0
      %292 = vmatpush1.msra.mxu0 0.0
      %293 = vmatprep.subr.mxu0 0.0
      %294 = vmatpush1.msra.mxu0 0.0
      %295 = vmatprep.subr.mxu0 0.0
      %296 = vmatpush1.msra.mxu0 0.0
      %297 = vmatprep.subr.mxu0 0.0
      %298 = vmatpush1.msra.mxu0 0.0
      %299 = vmatprep.subr.mxu0 0.0
      %300 = vmatpush1.msra.mxu0 0.0
      %301 = vmatprep.subr.mxu0 0.0
      %302 = vmatpush1.msra.mxu0 0.0
      %303 = vmatprep.subr.mxu0 0.0
      %304 = vmatpush1.msra.mxu0 0.0
      %305 = vmatprep.subr.mxu0 0.0
      %306 = vmatpush1.msra.mxu0 0.0
      %307 = vmatprep.subr.mxu0 0.0
      %308 = vmatpush1.msra.mxu0 0.0
      %v309 = vand.u32 %v182, 4294901760
      %v310 = vsub.f32 %v182, %v309
      %v311 = vand.u32 %v310, 4294901760
      %v312 = vsub.f32 %v310, %v311
      %v313 = vand.u32 %v312, 4294901760
      %314 = vmatprep.subr.mxu0 %v313
      %v315 = vand.u32 %v179, 4294901760
      %v316 = vsub.f32 %v179, %v315
      %v317 = vand.u32 %v316, 4294901760
      %v318 = vsub.f32 %v316, %v317
      %v319 = vand.u32 %v318, 4294901760
      %320 = vmatpush1.msra.mxu0 %v319
      %v321 = vand.u32 %v163, 4294901760
      %v322 = vsub.f32 %v163, %v321
      %v323 = vand.u32 %v322, 4294901760
      %v324 = vsub.f32 %v322, %v323
      %v325 = vand.u32 %v324, 4294901760
      %326 = vmatprep.subr.mxu0 %v325
      %v327 = vand.u32 %v162, 4294901760
      %v328 = vsub.f32 %v162, %v327
      %v329 = vand.u32 %v328, 4294901760
      %v330 = vsub.f32 %v328, %v329
      %v331 = vand.u32 %v330, 4294901760
      %332 = vmatpush1.msra.mxu0 %v331
      %v333 = vand.u32 %v159, 4294901760
      %v334 = vsub.f32 %v159, %v333
      %v335 = vand.u32 %v334, 4294901760
      %v336 = vsub.f32 %v334, %v335
      %v337 = vand.u32 %v336, 4294901760
      %338 = vmatprep.subr.mxu0 %v337
      %v339 = vand.u32 %v158, 4294901760
      %v340 = vsub.f32 %v158, %v339
      %v341 = vand.u32 %v340, 4294901760
      %v342 = vsub.f32 %v340, %v341
      %v343 = vand.u32 %v342, 4294901760
      %344 = vmatpush1.msra.mxu0 %v343
      %v345 = vand.u32 %v155, 4294901760
      %v346 = vsub.f32 %v155, %v345
      %v347 = vand.u32 %v346, 4294901760
      %v348 = vsub.f32 %v346, %v347
      %v349 = vand.u32 %v348, 4294901760
      %350 = vmatprep.subr.mxu0 %v349
      %v351 = vand.u32 %v154, 4294901760
      %v352 = vsub.f32 %v154, %v351
      %v353 = vand.u32 %v352, 4294901760
      %v354 = vsub.f32 %v352, %v353
      %v355 = vand.u32 %v354, 4294901760
      %356 = vmatpush1.msra.mxu0 %v355
      %357 = vmatprep.subr.mxu0 0.0
      %358 = vmatpush2.msra.mxu0 0.0
      %359 = vmatprep.subr.mxu0 0.0
      %360 = vmatpush2.msra.mxu0 0.0
      %361 = vmatprep.subr.mxu0 0.0
      %362 = vmatpush2.msra.mxu0 0.0
      %363 = vmatprep.subr.mxu0 0.0
      %364 = vmatpush2.msra.mxu0 0.0
      %365 = vmatprep.subr.mxu0 0.0
      %366 = vmatpush2.msra.mxu0 0.0
      %367 = vmatprep.subr.mxu0 0.0
      %368 = vmatpush2.msra.mxu0 0.0
      %369 = vmatprep.subr.mxu0 0.0
      %370 = vmatpush2.msra.mxu0 0.0
      %371 = vmatprep.subr.mxu0 0.0
      %372 = vmatpush2.msra.mxu0 0.0
      %373 = vmatprep.subr.mxu0 0.0
      %374 = vmatpush2.msra.mxu0 0.0
      %375 = vmatprep.subr.mxu0 0.0
      %376 = vmatpush2.msra.mxu0 0.0
      %377 = vmatprep.subr.mxu0 0.0
      %378 = vmatpush2.msra.mxu0 0.0
      %379 = vmatprep.subr.mxu0 0.0
      %380 = vmatpush2.msra.mxu0 0.0
      %381 = vmatprep.subr.mxu0 0.0
      %382 = vmatpush2.msra.mxu0 0.0
      %383 = vmatprep.subr.mxu0 0.0
      %384 = vmatpush2.msra.mxu0 0.0
      %385 = vmatprep.subr.mxu0 0.0
      %386 = vmatpush2.msra.mxu0 0.0
      %387 = vmatprep.subr.mxu0 0.0
      %388 = vmatpush2.msra.mxu0 0.0
      %389 = vmatprep.mubr.f32.mxu0 0.0
      %v390 = vand.u32 %v172, 4294901760
      %391 = vmatmul.mubr.f32.gmra.mxu0 %v390
      %v392 = vpop.f32.mrf.mxu0
      %v393 = vadd.f32 %v270, %v392
      %v394 = vpop.f32.mrf.mxu0
      %v395 = vadd.f32 %v272, %v394
      %396 = vmatprep.mubr.f32.mxu0 0.0
      %v397 = vand.u32 %v175, 4294901760
      %398 = vmatmul.mubr.f32.gmra.mxu0 %v397
      %v399 = vpop.f32.mrf.mxu0
      %v400 = vadd.f32 %v281, %v399
      %v401 = vpop.f32.mrf.mxu0
      %v402 = vadd.f32 %v283, %v401
      %403 = vdwg.mxu0
      %404 = vmatprep.subr.mxu0 0.0
      %405 = vmatpush1.msra.mxu0 0.0
      %406 = vmatprep.subr.mxu0 0.0
      %407 = vmatpush1.msra.mxu0 0.0
      %408 = vmatprep.subr.mxu0 0.0
      %409 = vmatpush1.msra.mxu0 0.0
      %410 = vmatprep.subr.mxu0 0.0
      %411 = vmatpush1.msra.mxu0 0.0
      %412 = vmatprep.subr.mxu0 0.0
      %413 = vmatpush1.msra.mxu0 0.0
      %414 = vmatprep.subr.mxu0 0.0
      %415 = vmatpush1.msra.mxu0 0.0
      %416 = vmatprep.subr.mxu0 0.0
      %417 = vmatpush1.msra.mxu0 0.0
      %418 = vmatprep.subr.mxu0 0.0
      %419 = vmatpush1.msra.mxu0 0.0
      %420 = vmatprep.subr.mxu0 0.0
      %421 = vmatpush1.msra.mxu0 0.0
      %422 = vmatprep.subr.mxu0 0.0
      %423 = vmatpush1.msra.mxu0 0.0
      %424 = vmatprep.subr.mxu0 0.0
      %425 = vmatpush1.msra.mxu0 0.0
      %426 = vmatprep.subr.mxu0 0.0
      %427 = vmatpush1.msra.mxu0 0.0
      %v428 = vand.u32 %v182, 4294901760
      %v429 = vsub.f32 %v182, %v428
      %430 = vmatprep.subr.mxu0 %v429
      %v431 = vand.u32 %v179, 4294901760
      %v432 = vsub.f32 %v179, %v431
      %433 = vmatpush1.msra.mxu0 %v432
      %v434 = vand.u32 %v163, 4294901760
      %v435 = vsub.f32 %v163, %v434
      %436 = vmatprep.subr.mxu0 %v435
      %v437 = vand.u32 %v162, 4294901760
      %v438 = vsub.f32 %v162, %v437
      %439 = vmatpush1.msra.mxu0 %v438
      %v440 = vand.u32 %v159, 4294901760
      %v441 = vsub.f32 %v159, %v440
      %442 = vmatprep.subr.mxu0 %v441
      %v443 = vand.u32 %v158, 4294901760
      %v444 = vsub.f32 %v158, %v443
      %445 = vmatpush1.msra.mxu0 %v444
      %v446 = vand.u32 %v155, 4294901760
      %v447 = vsub.f32 %v155, %v446
      %448 = vmatprep.subr.mxu0 %v447
      %v449 = vand.u32 %v154, 4294901760
      %v450 = vsub.f32 %v154, %v449
      %451 = vmatpush1.msra.mxu0 %v450
      %452 = vmatprep.subr.mxu0 0.0
      %453 = vmatpush2.msra.mxu0 0.0
      %454 = vmatprep.subr.mxu0 0.0
      %455 = vmatpush2.msra.mxu0 0.0
      %456 = vmatprep.subr.mxu0 0.0
      %457 = vmatpush2.msra.mxu0 0.0
      %458 = vmatprep.subr.mxu0 0.0
      %459 = vmatpush2.msra.mxu0 0.0
      %460 = vmatprep.subr.mxu0 0.0
      %461 = vmatpush2.msra.mxu0 0.0
      %462 = vmatprep.subr.mxu0 0.0
      %463 = vmatpush2.msra.mxu0 0.0
      %464 = vmatprep.subr.mxu0 0.0
      %465 = vmatpush2.msra.mxu0 0.0
      %466 = vmatprep.subr.mxu0 0.0
      %467 = vmatpush2.msra.mxu0 0.0
      %468 = vmatprep.subr.mxu0 0.0
      %469 = vmatpush2.msra.mxu0 0.0
      %470 = vmatprep.subr.mxu0 0.0
      %471 = vmatpush2.msra.mxu0 0.0
      %472 = vmatprep.subr.mxu0 0.0
      %473 = vmatpush2.msra.mxu0 0.0
      %474 = vmatprep.subr.mxu0 0.0
      %475 = vmatpush2.msra.mxu0 0.0
      %476 = vmatprep.subr.mxu0 0.0
      %477 = vmatpush2.msra.mxu0 0.0
      %478 = vmatprep.subr.mxu0 0.0
      %479 = vmatpush2.msra.mxu0 0.0
      %480 = vmatprep.subr.mxu0 0.0
      %481 = vmatpush2.msra.mxu0 0.0
      %482 = vmatprep.subr.mxu0 0.0
      %483 = vmatpush2.msra.mxu0 0.0
      %484 = vmatprep.mubr.f32.mxu0 0.0
      %v485 = vand.u32 %v172, 4294901760
      %v486 = vsub.f32 %v172, %v485
      %487 = vmatmul.mubr.f32.gmra.mxu0 %v486
      %v488 = vpop.f32.mrf.mxu0
      %v489 = vadd.f32 %v393, %v488
      %v490 = vpop.f32.mrf.mxu0
      %v491 = vadd.f32 %v395, %v490
      %492 = vmatprep.mubr.f32.mxu0 0.0
      %v493 = vand.u32 %v175, 4294901760
      %v494 = vsub.f32 %v175, %v493
      %495 = vmatmul.mubr.f32.gmra.mxu0 %v494
      %v496 = vpop.f32.mrf.mxu0
      %v497 = vadd.f32 %v400, %v496
      %v498 = vpop.f32.mrf.mxu0
      %v499 = vadd.f32 %v402, %v498
      %500 = vdwg.mxu0
      %501 = vmatprep.subr.mxu0 0.0
      %502 = vmatpush1.msra.mxu0 0.0
      %503 = vmatprep.subr.mxu0 0.0
      %504 = vmatpush1.msra.mxu0 0.0
      %505 = vmatprep.subr.mxu0 0.0
      %506 = vmatpush1.msra.mxu0 0.0
      %507 = vmatprep.subr.mxu0 0.0
      %508 = vmatpush1.msra.mxu0 0.0
      %509 = vmatprep.subr.mxu0 0.0
      %510 = vmatpush1.msra.mxu0 0.0
      %511 = vmatprep.subr.mxu0 0.0
      %512 = vmatpush1.msra.mxu0 0.0
      %513 = vmatprep.subr.mxu0 0.0
      %514 = vmatpush1.msra.mxu0 0.0
      %515 = vmatprep.subr.mxu0 0.0
      %516 = vmatpush1.msra.mxu0 0.0
      %517 = vmatprep.subr.mxu0 0.0
      %518 = vmatpush1.msra.mxu0 0.0
      %519 = vmatprep.subr.mxu0 0.0
      %520 = vmatpush1.msra.mxu0 0.0
      %521 = vmatprep.subr.mxu0 0.0
      %522 = vmatpush1.msra.mxu0 0.0
      %523 = vmatprep.subr.mxu0 0.0
      %524 = vmatpush1.msra.mxu0 0.0
      %v525 = vand.u32 %v182, 4294901760
      %526 = vmatprep.subr.mxu0 %v525
      %v527 = vand.u32 %v179, 4294901760
      %528 = vmatpush1.msra.mxu0 %v527
      %v529 = vand.u32 %v163, 4294901760
      %530 = vmatprep.subr.mxu0 %v529
      %v531 = vand.u32 %v162, 4294901760
      %532 = vmatpush1.msra.mxu0 %v531
      %v533 = vand.u32 %v159, 4294901760
      %534 = vmatprep.subr.mxu0 %v533
      %v535 = vand.u32 %v158, 4294901760
      %536 = vmatpush1.msra.mxu0 %v535
      %v537 = vand.u32 %v155, 4294901760
      %538 = vmatprep.subr.mxu0 %v537
      %v539 = vand.u32 %v154, 4294901760
      %540 = vmatpush1.msra.mxu0 %v539
      %541 = vmatprep.subr.mxu0 0.0
      %542 = vmatpush2.msra.mxu0 0.0
      %543 = vmatprep.subr.mxu0 0.0
      %544 = vmatpush2.msra.mxu0 0.0
      %545 = vmatprep.subr.mxu0 0.0
      %546 = vmatpush2.msra.mxu0 0.0
      %547 = vmatprep.subr.mxu0 0.0
      %548 = vmatpush2.msra.mxu0 0.0
      %549 = vmatprep.subr.mxu0 0.0
      %550 = vmatpush2.msra.mxu0 0.0
      %551 = vmatprep.subr.mxu0 0.0
      %552 = vmatpush2.msra.mxu0 0.0
      %553 = vmatprep.subr.mxu0 0.0
      %554 = vmatpush2.msra.mxu0 0.0
      %555 = vmatprep.subr.mxu0 0.0
      %556 = vmatpush2.msra.mxu0 0.0
      %557 = vmatprep.subr.mxu0 0.0
      %558 = vmatpush2.msra.mxu0 0.0
      %559 = vmatprep.subr.mxu0 0.0
      %560 = vmatpush2.msra.mxu0 0.0
      %561 = vmatprep.subr.mxu0 0.0
      %562 = vmatpush2.msra.mxu0 0.0
      %563 = vmatprep.subr.mxu0 0.0
      %564 = vmatpush2.msra.mxu0 0.0
      %565 = vmatprep.subr.mxu0 0.0
      %566 = vmatpush2.msra.mxu0 0.0
      %567 = vmatprep.subr.mxu0 0.0
      %568 = vmatpush2.msra.mxu0 0.0
      %569 = vmatprep.subr.mxu0 0.0
      %570 = vmatpush2.msra.mxu0 0.0
      %571 = vmatprep.subr.mxu0 0.0
      %572 = vmatpush2.msra.mxu0 0.0
      %573 = vmatprep.mubr.f32.mxu0 0.0
      %v574 = vand.u32 %v172, 4294901760
      %v575 = vsub.f32 %v172, %v574
      %v576 = vand.u32 %v575, 4294901760
      %577 = vmatmul.mubr.f32.gmra.mxu0 %v576
      %v578 = vpop.f32.mrf.mxu0
      %v579 = vadd.f32 %v489, %v578
      %v580 = vpop.f32.mrf.mxu0
      %v581 = vadd.f32 %v491, %v580
      %582 = vmatprep.mubr.f32.mxu0 0.0
      %v583 = vand.u32 %v175, 4294901760
      %v584 = vsub.f32 %v175, %v583
      %v585 = vand.u32 %v584, 4294901760
      %586 = vmatmul.mubr.f32.gmra.mxu0 %v585
      %v587 = vpop.f32.mrf.mxu0
      %v588 = vadd.f32 %v497, %v587
      %v589 = vpop.f32.mrf.mxu0
      %v590 = vadd.f32 %v499, %v589
      %591 = vdwg.mxu0
      %592 = vmatprep.subr.mxu0 0.0
      %593 = vmatpush1.msra.mxu0 0.0
      %594 = vmatprep.subr.mxu0 0.0
      %595 = vmatpush1.msra.mxu0 0.0
      %596 = vmatprep.subr.mxu0 0.0
      %597 = vmatpush1.msra.mxu0 0.0
      %598 = vmatprep.subr.mxu0 0.0
      %599 = vmatpush1.msra.mxu0 0.0
      %600 = vmatprep.subr.mxu0 0.0
      %601 = vmatpush1.msra.mxu0 0.0
      %602 = vmatprep.subr.mxu0 0.0
      %603 = vmatpush1.msra.mxu0 0.0
      %604 = vmatprep.subr.mxu0 0.0
      %605 = vmatpush1.msra.mxu0 0.0
      %606 = vmatprep.subr.mxu0 0.0
      %607 = vmatpush1.msra.mxu0 0.0
      %608 = vmatprep.subr.mxu0 0.0
      %609 = vmatpush1.msra.mxu0 0.0
      %610 = vmatprep.subr.mxu0 0.0
      %611 = vmatpush1.msra.mxu0 0.0
      %612 = vmatprep.subr.mxu0 0.0
      %613 = vmatpush1.msra.mxu0 0.0
      %614 = vmatprep.subr.mxu0 0.0
      %615 = vmatpush1.msra.mxu0 0.0
      %v616 = vand.u32 %v182, 4294901760
      %v617 = vsub.f32 %v182, %v616
      %v618 = vand.u32 %v617, 4294901760
      %619 = vmatprep.subr.mxu0 %v618
      %v620 = vand.u32 %v179, 4294901760
      %v621 = vsub.f32 %v179, %v620
      %v622 = vand.u32 %v621, 4294901760
      %623 = vmatpush1.msra.mxu0 %v622
      %v624 = vand.u32 %v163, 4294901760
      %v625 = vsub.f32 %v163, %v624
      %v626 = vand.u32 %v625, 4294901760
      %627 = vmatprep.subr.mxu0 %v626
      %v628 = vand.u32 %v162, 4294901760
      %v629 = vsub.f32 %v162, %v628
      %v630 = vand.u32 %v629, 4294901760
      %631 = vmatpush1.msra.mxu0 %v630
      %v632 = vand.u32 %v159, 4294901760
      %v633 = vsub.f32 %v159, %v632
      %v634 = vand.u32 %v633, 4294901760
      %635 = vmatprep.subr.mxu0 %v634
      %v636 = vand.u32 %v158, 4294901760
      %v637 = vsub.f32 %v158, %v636
      %v638 = vand.u32 %v637, 4294901760
      %639 = vmatpush1.msra.mxu0 %v638
      %v640 = vand.u32 %v155, 4294901760
      %v641 = vsub.f32 %v155, %v640
      %v642 = vand.u32 %v641, 4294901760
      %643 = vmatprep.subr.mxu0 %v642
      %v644 = vand.u32 %v154, 4294901760
      %v645 = vsub.f32 %v154, %v644
      %v646 = vand.u32 %v645, 4294901760
      %647 = vmatpush1.msra.mxu0 %v646
      %648 = vmatprep.subr.mxu0 0.0
      %649 = vmatpush2.msra.mxu0 0.0
      %650 = vmatprep.subr.mxu0 0.0
      %651 = vmatpush2.msra.mxu0 0.0
      %652 = vmatprep.subr.mxu0 0.0
      %653 = vmatpush2.msra.mxu0 0.0
      %654 = vmatprep.subr.mxu0 0.0
      %655 = vmatpush2.msra.mxu0 0.0
      %656 = vmatprep.subr.mxu0 0.0
      %657 = vmatpush2.msra.mxu0 0.0
      %658 = vmatprep.subr.mxu0 0.0
      %659 = vmatpush2.msra.mxu0 0.0
      %660 = vmatprep.subr.mxu0 0.0
      %661 = vmatpush2.msra.mxu0 0.0
      %662 = vmatprep.subr.mxu0 0.0
      %663 = vmatpush2.msra.mxu0 0.0
      %664 = vmatprep.subr.mxu0 0.0
      %665 = vmatpush2.msra.mxu0 0.0
      %666 = vmatprep.subr.mxu0 0.0
      %667 = vmatpush2.msra.mxu0 0.0
      %668 = vmatprep.subr.mxu0 0.0
      %669 = vmatpush2.msra.mxu0 0.0
      %670 = vmatprep.subr.mxu0 0.0
      %671 = vmatpush2.msra.mxu0 0.0
      %672 = vmatprep.subr.mxu0 0.0
      %673 = vmatpush2.msra.mxu0 0.0
      %674 = vmatprep.subr.mxu0 0.0
      %675 = vmatpush2.msra.mxu0 0.0
      %676 = vmatprep.subr.mxu0 0.0
      %677 = vmatpush2.msra.mxu0 0.0
      %678 = vmatprep.subr.mxu0 0.0
      %679 = vmatpush2.msra.mxu0 0.0
      %680 = vmatprep.mubr.f32.mxu0 0.0
      %v681 = vand.u32 %v172, 4294901760
      %682 = vmatmul.mubr.f32.gmra.mxu0 %v681
      %v683 = vpop.f32.mrf.mxu0
      %v684 = vadd.f32 %v579, %v683
      %v685 = vpop.f32.mrf.mxu0
      %v686 = vadd.f32 %v581, %v685
      %687 = vmatprep.mubr.f32.mxu0 0.0
      %v688 = vand.u32 %v175, 4294901760
      %689 = vmatmul.mubr.f32.gmra.mxu0 %v688
      %v690 = vpop.f32.mrf.mxu0
      %v691 = vadd.f32 %v588, %v690
      %v692 = vpop.f32.mrf.mxu0
      %v693 = vadd.f32 %v590, %v692
      %694 = vdwg.mxu0
      %695 = vmatprep.subr.mxu0 0.0
      %696 = vmatpush1.msra.mxu0 0.0
      %697 = vmatprep.subr.mxu0 0.0
      %698 = vmatpush1.msra.mxu0 0.0
      %699 = vmatprep.subr.mxu0 0.0
      %700 = vmatpush1.msra.mxu0 0.0
      %701 = vmatprep.subr.mxu0 0.0
      %702 = vmatpush1.msra.mxu0 0.0
      %703 = vmatprep.subr.mxu0 0.0
      %704 = vmatpush1.msra.mxu0 0.0
      %705 = vmatprep.subr.mxu0 0.0
      %706 = vmatpush1.msra.mxu0 0.0
      %707 = vmatprep.subr.mxu0 0.0
      %708 = vmatpush1.msra.mxu0 0.0
      %709 = vmatprep.subr.mxu0 0.0
      %710 = vmatpush1.msra.mxu0 0.0
      %711 = vmatprep.subr.mxu0 0.0
      %712 = vmatpush1.msra.mxu0 0.0
      %713 = vmatprep.subr.mxu0 0.0
      %714 = vmatpush1.msra.mxu0 0.0
      %715 = vmatprep.subr.mxu0 0.0
      %716 = vmatpush1.msra.mxu0 0.0
      %717 = vmatprep.subr.mxu0 0.0
      %718 = vmatpush1.msra.mxu0 0.0
      %v719 = vand.u32 %v182, 4294901760
      %720 = vmatprep.subr.mxu0 %v719
      %v721 = vand.u32 %v179, 4294901760
      %722 = vmatpush1.msra.mxu0 %v721
      %v723 = vand.u32 %v163, 4294901760
      %724 = vmatprep.subr.mxu0 %v723
      %v725 = vand.u32 %v162, 4294901760
      %726 = vmatpush1.msra.mxu0 %v725
      %v727 = vand.u32 %v159, 4294901760
      %728 = vmatprep.subr.mxu0 %v727
      %v729 = vand.u32 %v158, 4294901760
      %730 = vmatpush1.msra.mxu0 %v729
      %v731 = vand.u32 %v155, 4294901760
      %732 = vmatprep.subr.mxu0 %v731
      %v733 = vand.u32 %v154, 4294901760
      %734 = vmatpush1.msra.mxu0 %v733
      %735 = vmatprep.subr.mxu0 0.0
      %736 = vmatpush2.msra.mxu0 0.0
      %737 = vmatprep.subr.mxu0 0.0
      %738 = vmatpush2.msra.mxu0 0.0
      %739 = vmatprep.subr.mxu0 0.0
      %740 = vmatpush2.msra.mxu0 0.0
      %741 = vmatprep.subr.mxu0 0.0
      %742 = vmatpush2.msra.mxu0 0.0
      %743 = vmatprep.subr.mxu0 0.0
      %744 = vmatpush2.msra.mxu0 0.0
      %745 = vmatprep.subr.mxu0 0.0
      %746 = vmatpush2.msra.mxu0 0.0
      %747 = vmatprep.subr.mxu0 0.0
      %748 = vmatpush2.msra.mxu0 0.0
      %749 = vmatprep.subr.mxu0 0.0
      %750 = vmatpush2.msra.mxu0 0.0
      %751 = vmatprep.subr.mxu0 0.0
      %752 = vmatpush2.msra.mxu0 0.0
      %753 = vmatprep.subr.mxu0 0.0
      %754 = vmatpush2.msra.mxu0 0.0
      %755 = vmatprep.subr.mxu0 0.0
      %756 = vmatpush2.msra.mxu0 0.0
      %757 = vmatprep.subr.mxu0 0.0
      %758 = vmatpush2.msra.mxu0 0.0
      %759 = vmatprep.subr.mxu0 0.0
      %760 = vmatpush2.msra.mxu0 0.0
      %761 = vmatprep.subr.mxu0 0.0
      %762 = vmatpush2.msra.mxu0 0.0
      %763 = vmatprep.subr.mxu0 0.0
      %764 = vmatpush2.msra.mxu0 0.0
      %765 = vmatprep.subr.mxu0 0.0
      %766 = vmatpush2.msra.mxu0 0.0
      %767 = vmatprep.mubr.f32.mxu0 0.0
      %v768 = vand.u32 %v172, 4294901760
      %769 = vmatmul.mubr.f32.gmra.mxu0 %v768
      %v770 = vpop.f32.mrf.mxu0
      %v771 = vadd.f32 %v684, %v770
      %v772 = vpop.f32.mrf.mxu0
      %v773 = vadd.f32 %v686, %v772
      %774 = vmatprep.mubr.f32.mxu0 0.0
      %v775 = vand.u32 %v175, 4294901760
      %776 = vmatmul.mubr.f32.gmra.mxu0 %v775
      %v777 = vpop.f32.mrf.mxu0
      %v778 = vadd.f32 %v691, %v777
      %v779 = vpop.f32.mrf.mxu0
      %v780 = vadd.f32 %v693, %v779
      %781 = vdwg.mxu0
      %782 = vmatprep.subr.mxu0 0.0
      %783 = vmatpush1.msra.mxu0 0.0
      %784 = vmatprep.subr.mxu0 0.0
      %785 = vmatpush1.msra.mxu0 0.0
      %786 = vmatprep.subr.mxu0 0.0
      %787 = vmatpush1.msra.mxu0 0.0
      %788 = vmatprep.subr.mxu0 0.0
      %789 = vmatpush1.msra.mxu0 0.0
      %790 = vmatprep.subr.mxu0 0.0
      %791 = vmatpush1.msra.mxu0 0.0
      %792 = vmatprep.subr.mxu0 0.0
      %793 = vmatpush1.msra.mxu0 0.0
      %794 = vmatprep.subr.mxu0 0.0
      %795 = vmatpush1.msra.mxu0 0.0
      %796 = vmatprep.subr.mxu0 0.0
      %797 = vmatpush1.msra.mxu0 0.0
      %798 = vmatprep.subr.mxu0 0.0
      %799 = vmatpush1.msra.mxu0 0.0
      %800 = vmatprep.subr.mxu0 0.0
      %801 = vmatpush1.msra.mxu0 0.0
      %802 = vmatprep.subr.mxu0 0.0
      %803 = vmatpush1.msra.mxu0 0.0
      %804 = vmatprep.subr.mxu0 0.0
      %805 = vmatpush1.msra.mxu0 0.0
      %v806 = vand.u32 %v188, 4294901760
      %807 = vmatprep.subr.mxu0 %v806
      %v808 = vand.u32 %v185, 4294901760
      %809 = vmatpush1.msra.mxu0 %v808
      %v810 = vand.u32 %v165, 4294901760
      %811 = vmatprep.subr.mxu0 %v810
      %v812 = vand.u32 %v164, 4294901760
      %813 = vmatpush1.msra.mxu0 %v812
      %v814 = vand.u32 %v161, 4294901760
      %815 = vmatprep.subr.mxu0 %v814
      %v816 = vand.u32 %v160, 4294901760
      %817 = vmatpush1.msra.mxu0 %v816
      %v818 = vand.u32 %v157, 4294901760
      %819 = vmatprep.subr.mxu0 %v818
      %v820 = vand.u32 %v156, 4294901760
      %821 = vmatpush1.msra.mxu0 %v820
      %822 = vmatprep.subr.mxu0 0.0
      %823 = vmatpush2.msra.mxu0 0.0
      %824 = vmatprep.subr.mxu0 0.0
      %825 = vmatpush2.msra.mxu0 0.0
      %826 = vmatprep.subr.mxu0 0.0
      %827 = vmatpush2.msra.mxu0 0.0
      %828 = vmatprep.subr.mxu0 0.0
      %829 = vmatpush2.msra.mxu0 0.0
      %830 = vmatprep.subr.mxu0 0.0
      %831 = vmatpush2.msra.mxu0 0.0
      %832 = vmatprep.subr.mxu0 0.0
      %833 = vmatpush2.msra.mxu0 0.0
      %834 = vmatprep.subr.mxu0 0.0
      %835 = vmatpush2.msra.mxu0 0.0
      %836 = vmatprep.subr.mxu0 0.0
      %837 = vmatpush2.msra.mxu0 0.0
      %838 = vmatprep.subr.mxu0 0.0
      %839 = vmatpush2.msra.mxu0 0.0
      %840 = vmatprep.subr.mxu0 0.0
      %841 = vmatpush2.msra.mxu0 0.0
      %842 = vmatprep.subr.mxu0 0.0
      %843 = vmatpush2.msra.mxu0 0.0
      %844 = vmatprep.subr.mxu0 0.0
      %845 = vmatpush2.msra.mxu0 0.0
      %846 = vmatprep.subr.mxu0 0.0
      %847 = vmatpush2.msra.mxu0 0.0
      %848 = vmatprep.subr.mxu0 0.0
      %849 = vmatpush2.msra.mxu0 0.0
      %850 = vmatprep.subr.mxu0 0.0
      %851 = vmatpush2.msra.mxu0 0.0
      %852 = vmatprep.subr.mxu0 0.0
      %853 = vmatpush2.msra.mxu0 0.0
      %854 = vmatprep.mubr.f32.mxu0 0.0
      %v855 = vand.u32 %v172, 4294901760
      %v856 = vsub.f32 %v172, %v855
      %v857 = vand.u32 %v856, 4294901760
      %v858 = vsub.f32 %v856, %v857
      %v859 = vand.u32 %v858, 4294901760
      %860 = vmatmul.mubr.f32.gmra.mxu0 %v859
      %v861 = vpop.f32.mrf.mxu0
      %v862 = vadd.f32 0.0, %v861
      %v863 = vpop.f32.mrf.mxu0
      %v864 = vadd.f32 0.0, %v863
      %865 = vmatprep.mubr.f32.mxu0 0.0
      %v866 = vand.u32 %v175, 4294901760
      %v867 = vsub.f32 %v175, %v866
      %v868 = vand.u32 %v867, 4294901760
      %v869 = vsub.f32 %v867, %v868
      %v870 = vand.u32 %v869, 4294901760
      %871 = vmatmul.mubr.f32.gmra.mxu0 %v870
      %v872 = vpop.f32.mrf.mxu0
      %v873 = vadd.f32 0.0, %v872
      %v874 = vpop.f32.mrf.mxu0
      %v875 = vadd.f32 0.0, %v874
      %876 = vdwg.mxu0
      %877 = vmatprep.subr.mxu0 0.0
      %878 = vmatpush1.msra.mxu0 0.0
      %879 = vmatprep.subr.mxu0 0.0
      %880 = vmatpush1.msra.mxu0 0.0
      %881 = vmatprep.subr.mxu0 0.0
      %882 = vmatpush1.msra.mxu0 0.0
      %883 = vmatprep.subr.mxu0 0.0
      %884 = vmatpush1.msra.mxu0 0.0
      %885 = vmatprep.subr.mxu0 0.0
      %886 = vmatpush1.msra.mxu0 0.0
      %887 = vmatprep.subr.mxu0 0.0
      %888 = vmatpush1.msra.mxu0 0.0
      %889 = vmatprep.subr.mxu0 0.0
      %890 = vmatpush1.msra.mxu0 0.0
      %891 = vmatprep.subr.mxu0 0.0
      %892 = vmatpush1.msra.mxu0 0.0
      %893 = vmatprep.subr.mxu0 0.0
      %894 = vmatpush1.msra.mxu0 0.0
      %895 = vmatprep.subr.mxu0 0.0
      %896 = vmatpush1.msra.mxu0 0.0
      %897 = vmatprep.subr.mxu0 0.0
      %898 = vmatpush1.msra.mxu0 0.0
      %899 = vmatprep.subr.mxu0 0.0
      %900 = vmatpush1.msra.mxu0 0.0
      %v901 = vand.u32 %v188, 4294901760
      %v902 = vsub.f32 %v188, %v901
      %v903 = vand.u32 %v902, 4294901760
      %v904 = vsub.f32 %v902, %v903
      %v905 = vand.u32 %v904, 4294901760
      %906 = vmatprep.subr.mxu0 %v905
      %v907 = vand.u32 %v185, 4294901760
      %v908 = vsub.f32 %v185, %v907
      %v909 = vand.u32 %v908, 4294901760
      %v910 = vsub.f32 %v908, %v909
      %v911 = vand.u32 %v910, 4294901760
      %912 = vmatpush1.msra.mxu0 %v911
      %v913 = vand.u32 %v165, 4294901760
      %v914 = vsub.f32 %v165, %v913
      %v915 = vand.u32 %v914, 4294901760
      %v916 = vsub.f32 %v914, %v915
      %v917 = vand.u32 %v916, 4294901760
      %918 = vmatprep.subr.mxu0 %v917
      %v919 = vand.u32 %v164, 4294901760
      %v920 = vsub.f32 %v164, %v919
      %v921 = vand.u32 %v920, 4294901760
      %v922 = vsub.f32 %v920, %v921
      %v923 = vand.u32 %v922, 4294901760
      %924 = vmatpush1.msra.mxu0 %v923
      %v925 = vand.u32 %v161, 4294901760
      %v926 = vsub.f32 %v161, %v925
      %v927 = vand.u32 %v926, 4294901760
      %v928 = vsub.f32 %v926, %v927
      %v929 = vand.u32 %v928, 4294901760
      %930 = vmatprep.subr.mxu0 %v929
      %v931 = vand.u32 %v160, 4294901760
      %v932 = vsub.f32 %v160, %v931
      %v933 = vand.u32 %v932, 4294901760
      %v934 = vsub.f32 %v932, %v933
      %v935 = vand.u32 %v934, 4294901760
      %936 = vmatpush1.msra.mxu0 %v935
      %v937 = vand.u32 %v157, 4294901760
      %v938 = vsub.f32 %v157, %v937
      %v939 = vand.u32 %v938, 4294901760
      %v940 = vsub.f32 %v938, %v939
      %v941 = vand.u32 %v940, 4294901760
      %942 = vmatprep.subr.mxu0 %v941
      %v943 = vand.u32 %v156, 4294901760
      %v944 = vsub.f32 %v156, %v943
      %v945 = vand.u32 %v944, 4294901760
      %v946 = vsub.f32 %v944, %v945
      %v947 = vand.u32 %v946, 4294901760
      %948 = vmatpush1.msra.mxu0 %v947
      %949 = vmatprep.subr.mxu0 0.0
      %950 = vmatpush2.msra.mxu0 0.0
      %951 = vmatprep.subr.mxu0 0.0
      %952 = vmatpush2.msra.mxu0 0.0
      %953 = vmatprep.subr.mxu0 0.0
      %954 = vmatpush2.msra.mxu0 0.0
      %955 = vmatprep.subr.mxu0 0.0
      %956 = vmatpush2.msra.mxu0 0.0
      %957 = vmatprep.subr.mxu0 0.0
      %958 = vmatpush2.msra.mxu0 0.0
      %959 = vmatprep.subr.mxu0 0.0
      %960 = vmatpush2.msra.mxu0 0.0
      %961 = vmatprep.subr.mxu0 0.0
      %962 = vmatpush2.msra.mxu0 0.0
      %963 = vmatprep.subr.mxu0 0.0
      %964 = vmatpush2.msra.mxu0 0.0
      %965 = vmatprep.subr.mxu0 0.0
      %966 = vmatpush2.msra.mxu0 0.0
      %967 = vmatprep.subr.mxu0 0.0
      %968 = vmatpush2.msra.mxu0 0.0
      %969 = vmatprep.subr.mxu0 0.0
      %970 = vmatpush2.msra.mxu0 0.0
      %971 = vmatprep.subr.mxu0 0.0
      %972 = vmatpush2.msra.mxu0 0.0
      %973 = vmatprep.subr.mxu0 0.0
      %974 = vmatpush2.msra.mxu0 0.0
      %975 = vmatprep.subr.mxu0 0.0
      %976 = vmatpush2.msra.mxu0 0.0
      %977 = vmatprep.subr.mxu0 0.0
      %978 = vmatpush2.msra.mxu0 0.0
      %979 = vmatprep.subr.mxu0 0.0
      %980 = vmatpush2.msra.mxu0 0.0
      %981 = vmatprep.mubr.f32.mxu0 0.0
      %v982 = vand.u32 %v172, 4294901760
      %983 = vmatmul.mubr.f32.gmra.mxu0 %v982
      %v984 = vpop.f32.mrf.mxu0
      %v985 = vadd.f32 %v862, %v984
      %v986 = vpop.f32.mrf.mxu0
      %v987 = vadd.f32 %v864, %v986
      %988 = vmatprep.mubr.f32.mxu0 0.0
      %v989 = vand.u32 %v175, 4294901760
      %990 = vmatmul.mubr.f32.gmra.mxu0 %v989
      %v991 = vpop.f32.mrf.mxu0
      %v992 = vadd.f32 %v873, %v991
      %v993 = vpop.f32.mrf.mxu0
      %v994 = vadd.f32 %v875, %v993
      %995 = vdwg.mxu0
      %996 = vmatprep.subr.mxu0 0.0
      %997 = vmatpush1.msra.mxu0 0.0
      %998 = vmatprep.subr.mxu0 0.0
      %999 = vmatpush1.msra.mxu0 0.0
      %1000 = vmatprep.subr.mxu0 0.0
      %1001 = vmatpush1.msra.mxu0 0.0
      %1002 = vmatprep.subr.mxu0 0.0
      %1003 = vmatpush1.msra.mxu0 0.0
      %1004 = vmatprep.subr.mxu0 0.0
      %1005 = vmatpush1.msra.mxu0 0.0
      %1006 = vmatprep.subr.mxu0 0.0
      %1007 = vmatpush1.msra.mxu0 0.0
      %1008 = vmatprep.subr.mxu0 0.0
      %1009 = vmatpush1.msra.mxu0 0.0
      %1010 = vmatprep.subr.mxu0 0.0
      %1011 = vmatpush1.msra.mxu0 0.0
      %1012 = vmatprep.subr.mxu0 0.0
      %1013 = vmatpush1.msra.mxu0 0.0
      %1014 = vmatprep.subr.mxu0 0.0
      %1015 = vmatpush1.msra.mxu0 0.0
      %1016 = vmatprep.subr.mxu0 0.0
      %1017 = vmatpush1.msra.mxu0 0.0
      %1018 = vmatprep.subr.mxu0 0.0
      %1019 = vmatpush1.msra.mxu0 0.0
      %v1020 = vand.u32 %v188, 4294901760
      %v1021 = vsub.f32 %v188, %v1020
      %1022 = vmatprep.subr.mxu0 %v1021
      %v1023 = vand.u32 %v185, 4294901760
      %v1024 = vsub.f32 %v185, %v1023
      %1025 = vmatpush1.msra.mxu0 %v1024
      %v1026 = vand.u32 %v165, 4294901760
      %v1027 = vsub.f32 %v165, %v1026
      %1028 = vmatprep.subr.mxu0 %v1027
      %v1029 = vand.u32 %v164, 4294901760
      %v1030 = vsub.f32 %v164, %v1029
      %1031 = vmatpush1.msra.mxu0 %v1030
      %v1032 = vand.u32 %v161, 4294901760
      %v1033 = vsub.f32 %v161, %v1032
      %1034 = vmatprep.subr.mxu0 %v1033
      %v1035 = vand.u32 %v160, 4294901760
      %v1036 = vsub.f32 %v160, %v1035
      %1037 = vmatpush1.msra.mxu0 %v1036
      %v1038 = vand.u32 %v157, 4294901760
      %v1039 = vsub.f32 %v157, %v1038
      %1040 = vmatprep.subr.mxu0 %v1039
      %v1041 = vand.u32 %v156, 4294901760
      %v1042 = vsub.f32 %v156, %v1041
      %1043 = vmatpush1.msra.mxu0 %v1042
      %1044 = vmatprep.subr.mxu0 0.0
      %1045 = vmatpush2.msra.mxu0 0.0
      %1046 = vmatprep.subr.mxu0 0.0
      %1047 = vmatpush2.msra.mxu0 0.0
      %1048 = vmatprep.subr.mxu0 0.0
      %1049 = vmatpush2.msra.mxu0 0.0
      %1050 = vmatprep.subr.mxu0 0.0
      %1051 = vmatpush2.msra.mxu0 0.0
      %1052 = vmatprep.subr.mxu0 0.0
      %1053 = vmatpush2.msra.mxu0 0.0
      %1054 = vmatprep.subr.mxu0 0.0
      %1055 = vmatpush2.msra.mxu0 0.0
      %1056 = vmatprep.subr.mxu0 0.0
      %1057 = vmatpush2.msra.mxu0 0.0
      %1058 = vmatprep.subr.mxu0 0.0
      %1059 = vmatpush2.msra.mxu0 0.0
      %1060 = vmatprep.subr.mxu0 0.0
      %1061 = vmatpush2.msra.mxu0 0.0
      %1062 = vmatprep.subr.mxu0 0.0
      %1063 = vmatpush2.msra.mxu0 0.0
      %1064 = vmatprep.subr.mxu0 0.0
      %1065 = vmatpush2.msra.mxu0 0.0
      %1066 = vmatprep.subr.mxu0 0.0
      %1067 = vmatpush2.msra.mxu0 0.0
      %1068 = vmatprep.subr.mxu0 0.0
      %1069 = vmatpush2.msra.mxu0 0.0
      %1070 = vmatprep.subr.mxu0 0.0
      %1071 = vmatpush2.msra.mxu0 0.0
      %1072 = vmatprep.subr.mxu0 0.0
      %1073 = vmatpush2.msra.mxu0 0.0
      %1074 = vmatprep.subr.mxu0 0.0
      %1075 = vmatpush2.msra.mxu0 0.0
      %1076 = vmatprep.mubr.f32.mxu0 0.0
      %v1077 = vand.u32 %v172, 4294901760
      %v1078 = vsub.f32 %v172, %v1077
      %1079 = vmatmul.mubr.f32.gmra.mxu0 %v1078
      %v1080 = vpop.f32.mrf.mxu0
      %v1081 = vadd.f32 %v985, %v1080
      %v1082 = vpop.f32.mrf.mxu0
      %v1083 = vadd.f32 %v987, %v1082
      %1084 = vmatprep.mubr.f32.mxu0 0.0
      %v1085 = vand.u32 %v175, 4294901760
      %v1086 = vsub.f32 %v175, %v1085
      %1087 = vmatmul.mubr.f32.gmra.mxu0 %v1086
      %v1088 = vpop.f32.mrf.mxu0
      %v1089 = vadd.f32 %v992, %v1088
      %v1090 = vpop.f32.mrf.mxu0
      %v1091 = vadd.f32 %v994, %v1090
      %1092 = vdwg.mxu0
      %1093 = vmatprep.subr.mxu0 0.0
      %1094 = vmatpush1.msra.mxu0 0.0
      %1095 = vmatprep.subr.mxu0 0.0
      %1096 = vmatpush1.msra.mxu0 0.0
      %1097 = vmatprep.subr.mxu0 0.0
      %1098 = vmatpush1.msra.mxu0 0.0
      %1099 = vmatprep.subr.mxu0 0.0
      %1100 = vmatpush1.msra.mxu0 0.0
      %1101 = vmatprep.subr.mxu0 0.0
      %1102 = vmatpush1.msra.mxu0 0.0
      %1103 = vmatprep.subr.mxu0 0.0
      %1104 = vmatpush1.msra.mxu0 0.0
      %1105 = vmatprep.subr.mxu0 0.0
      %1106 = vmatpush1.msra.mxu0 0.0
      %1107 = vmatprep.subr.mxu0 0.0
      %1108 = vmatpush1.msra.mxu0 0.0
      %1109 = vmatprep.subr.mxu0 0.0
      %1110 = vmatpush1.msra.mxu0 0.0
      %1111 = vmatprep.subr.mxu0 0.0
      %1112 = vmatpush1.msra.mxu0 0.0
      %1113 = vmatprep.subr.mxu0 0.0
      %1114 = vmatpush1.msra.mxu0 0.0
      %1115 = vmatprep.subr.mxu0 0.0
      %1116 = vmatpush1.msra.mxu0 0.0
      %v1117 = vand.u32 %v188, 4294901760
      %1118 = vmatprep.subr.mxu0 %v1117
      %v1119 = vand.u32 %v185, 4294901760
      %1120 = vmatpush1.msra.mxu0 %v1119
      %v1121 = vand.u32 %v165, 4294901760
      %1122 = vmatprep.subr.mxu0 %v1121
      %v1123 = vand.u32 %v164, 4294901760
      %1124 = vmatpush1.msra.mxu0 %v1123
      %v1125 = vand.u32 %v161, 4294901760
      %1126 = vmatprep.subr.mxu0 %v1125
      %v1127 = vand.u32 %v160, 4294901760
      %1128 = vmatpush1.msra.mxu0 %v1127
      %v1129 = vand.u32 %v157, 4294901760
      %1130 = vmatprep.subr.mxu0 %v1129
      %v1131 = vand.u32 %v156, 4294901760
      %1132 = vmatpush1.msra.mxu0 %v1131
      %1133 = vmatprep.subr.mxu0 0.0
      %1134 = vmatpush2.msra.mxu0 0.0
      %1135 = vmatprep.subr.mxu0 0.0
      %1136 = vmatpush2.msra.mxu0 0.0
      %1137 = vmatprep.subr.mxu0 0.0
      %1138 = vmatpush2.msra.mxu0 0.0
      %1139 = vmatprep.subr.mxu0 0.0
      %1140 = vmatpush2.msra.mxu0 0.0
      %1141 = vmatprep.subr.mxu0 0.0
      %1142 = vmatpush2.msra.mxu0 0.0
      %1143 = vmatprep.subr.mxu0 0.0
      %1144 = vmatpush2.msra.mxu0 0.0
      %1145 = vmatprep.subr.mxu0 0.0
      %1146 = vmatpush2.msra.mxu0 0.0
      %1147 = vmatprep.subr.mxu0 0.0
      %1148 = vmatpush2.msra.mxu0 0.0
      %1149 = vmatprep.subr.mxu0 0.0
      %1150 = vmatpush2.msra.mxu0 0.0
      %1151 = vmatprep.subr.mxu0 0.0
      %1152 = vmatpush2.msra.mxu0 0.0
      %1153 = vmatprep.subr.mxu0 0.0
      %1154 = vmatpush2.msra.mxu0 0.0
      %1155 = vmatprep.subr.mxu0 0.0
      %1156 = vmatpush2.msra.mxu0 0.0
      %1157 = vmatprep.subr.mxu0 0.0
      %1158 = vmatpush2.msra.mxu0 0.0
      %1159 = vmatprep.subr.mxu0 0.0
      %1160 = vmatpush2.msra.mxu0 0.0
      %1161 = vmatprep.subr.mxu0 0.0
      %1162 = vmatpush2.msra.mxu0 0.0
      %1163 = vmatprep.subr.mxu0 0.0
      %1164 = vmatpush2.msra.mxu0 0.0
      %1165 = vmatprep.mubr.f32.mxu0 0.0
      %v1166 = vand.u32 %v172, 4294901760
      %v1167 = vsub.f32 %v172, %v1166
      %v1168 = vand.u32 %v1167, 4294901760
      %1169 = vmatmul.mubr.f32.gmra.mxu0 %v1168
      %v1170 = vpop.f32.mrf.mxu0
      %v1171 = vadd.f32 %v1081, %v1170
      %v1172 = vpop.f32.mrf.mxu0
      %v1173 = vadd.f32 %v1083, %v1172
      %1174 = vmatprep.mubr.f32.mxu0 0.0
      %v1175 = vand.u32 %v175, 4294901760
      %v1176 = vsub.f32 %v175, %v1175
      %v1177 = vand.u32 %v1176, 4294901760
      %1178 = vmatmul.mubr.f32.gmra.mxu0 %v1177
      %v1179 = vpop.f32.mrf.mxu0
      %v1180 = vadd.f32 %v1089, %v1179
      %v1181 = vpop.f32.mrf.mxu0
      %v1182 = vadd.f32 %v1091, %v1181
      %1183 = vdwg.mxu0
      %1184 = vmatprep.subr.mxu0 0.0
      %1185 = vmatpush1.msra.mxu0 0.0
      %1186 = vmatprep.subr.mxu0 0.0
      %1187 = vmatpush1.msra.mxu0 0.0
      %1188 = vmatprep.subr.mxu0 0.0
      %1189 = vmatpush1.msra.mxu0 0.0
      %1190 = vmatprep.subr.mxu0 0.0
      %1191 = vmatpush1.msra.mxu0 0.0
      %1192 = vmatprep.subr.mxu0 0.0
      %1193 = vmatpush1.msra.mxu0 0.0
      %1194 = vmatprep.subr.mxu0 0.0
      %1195 = vmatpush1.msra.mxu0 0.0
      %1196 = vmatprep.subr.mxu0 0.0
      %1197 = vmatpush1.msra.mxu0 0.0
      %1198 = vmatprep.subr.mxu0 0.0
      %1199 = vmatpush1.msra.mxu0 0.0
      %1200 = vmatprep.subr.mxu0 0.0
      %1201 = vmatpush1.msra.mxu0 0.0
      %1202 = vmatprep.subr.mxu0 0.0
      %1203 = vmatpush1.msra.mxu0 0.0
      %1204 = vmatprep.subr.mxu0 0.0
      %1205 = vmatpush1.msra.mxu0 0.0
      %1206 = vmatprep.subr.mxu0 0.0
      %1207 = vmatpush1.msra.mxu0 0.0
      %v1208 = vand.u32 %v188, 4294901760
      %v1209 = vsub.f32 %v188, %v1208
      %v1210 = vand.u32 %v1209, 4294901760
      %1211 = vmatprep.subr.mxu0 %v1210
      %v1212 = vand.u32 %v185, 4294901760
      %v1213 = vsub.f32 %v185, %v1212
      %v1214 = vand.u32 %v1213, 4294901760
      %1215 = vmatpush1.msra.mxu0 %v1214
      %v1216 = vand.u32 %v165, 4294901760
      %v1217 = vsub.f32 %v165, %v1216
      %v1218 = vand.u32 %v1217, 4294901760
      %1219 = vmatprep.subr.mxu0 %v1218
      %v1220 = vand.u32 %v164, 4294901760
      %v1221 = vsub.f32 %v164, %v1220
      %v1222 = vand.u32 %v1221, 4294901760
      %1223 = vmatpush1.msra.mxu0 %v1222
      %v1224 = vand.u32 %v161, 4294901760
      %v1225 = vsub.f32 %v161, %v1224
      %v1226 = vand.u32 %v1225, 4294901760
      %1227 = vmatprep.subr.mxu0 %v1226
      %v1228 = vand.u32 %v160, 4294901760
      %v1229 = vsub.f32 %v160, %v1228
      %v1230 = vand.u32 %v1229, 4294901760
      %1231 = vmatpush1.msra.mxu0 %v1230
      %v1232 = vand.u32 %v157, 4294901760
      %v1233 = vsub.f32 %v157, %v1232
      %v1234 = vand.u32 %v1233, 4294901760
      %1235 = vmatprep.subr.mxu0 %v1234
      %v1236 = vand.u32 %v156, 4294901760
      %v1237 = vsub.f32 %v156, %v1236
      %v1238 = vand.u32 %v1237, 4294901760
      %1239 = vmatpush1.msra.mxu0 %v1238
      %1240 = vmatprep.subr.mxu0 0.0
      %1241 = vmatpush2.msra.mxu0 0.0
      %1242 = vmatprep.subr.mxu0 0.0
      %1243 = vmatpush2.msra.mxu0 0.0
      %1244 = vmatprep.subr.mxu0 0.0
      %1245 = vmatpush2.msra.mxu0 0.0
      %1246 = vmatprep.subr.mxu0 0.0
      %1247 = vmatpush2.msra.mxu0 0.0
      %1248 = vmatprep.subr.mxu0 0.0
      %1249 = vmatpush2.msra.mxu0 0.0
      %1250 = vmatprep.subr.mxu0 0.0
      %1251 = vmatpush2.msra.mxu0 0.0
      %1252 = vmatprep.subr.mxu0 0.0
      %1253 = vmatpush2.msra.mxu0 0.0
      %1254 = vmatprep.subr.mxu0 0.0
      %1255 = vmatpush2.msra.mxu0 0.0
      %1256 = vmatprep.subr.mxu0 0.0
      %1257 = vmatpush2.msra.mxu0 0.0
      %1258 = vmatprep.subr.mxu0 0.0
      %1259 = vmatpush2.msra.mxu0 0.0
      %1260 = vmatprep.subr.mxu0 0.0
      %1261 = vmatpush2.msra.mxu0 0.0
      %1262 = vmatprep.subr.mxu0 0.0
      %1263 = vmatpush2.msra.mxu0 0.0
      %1264 = vmatprep.subr.mxu0 0.0
      %1265 = vmatpush2.msra.mxu0 0.0
      %1266 = vmatprep.subr.mxu0 0.0
      %1267 = vmatpush2.msra.mxu0 0.0
      %1268 = vmatprep.subr.mxu0 0.0
      %1269 = vmatpush2.msra.mxu0 0.0
      %1270 = vmatprep.subr.mxu0 0.0
      %1271 = vmatpush2.msra.mxu0 0.0
      %1272 = vmatprep.mubr.f32.mxu0 0.0
      %v1273 = vand.u32 %v172, 4294901760
      %1274 = vmatmul.mubr.f32.gmra.mxu0 %v1273
      %v1275 = vpop.f32.mrf.mxu0
      %v1276 = vadd.f32 %v1171, %v1275
      %v1277 = vpop.f32.mrf.mxu0
      %v1278 = vadd.f32 %v1173, %v1277
      %1279 = vmatprep.mubr.f32.mxu0 0.0
      %v1280 = vand.u32 %v175, 4294901760
      %1281 = vmatmul.mubr.f32.gmra.mxu0 %v1280
      %v1282 = vpop.f32.mrf.mxu0
      %v1283 = vadd.f32 %v1180, %v1282
      %v1284 = vpop.f32.mrf.mxu0
      %v1285 = vadd.f32 %v1182, %v1284
      %1286 = vdwg.mxu0
      %1287 = vmatprep.subr.mxu0 0.0
      %1288 = vmatpush1.msra.mxu0 0.0
      %1289 = vmatprep.subr.mxu0 0.0
      %1290 = vmatpush1.msra.mxu0 0.0
      %1291 = vmatprep.subr.mxu0 0.0
      %1292 = vmatpush1.msra.mxu0 0.0
      %1293 = vmatprep.subr.mxu0 0.0
      %1294 = vmatpush1.msra.mxu0 0.0
      %1295 = vmatprep.subr.mxu0 0.0
      %1296 = vmatpush1.msra.mxu0 0.0
      %1297 = vmatprep.subr.mxu0 0.0
      %1298 = vmatpush1.msra.mxu0 0.0
      %1299 = vmatprep.subr.mxu0 0.0
      %1300 = vmatpush1.msra.mxu0 0.0
      %1301 = vmatprep.subr.mxu0 0.0
      %1302 = vmatpush1.msra.mxu0 0.0
      %1303 = vmatprep.subr.mxu0 0.0
      %1304 = vmatpush1.msra.mxu0 0.0
      %1305 = vmatprep.subr.mxu0 0.0
      %1306 = vmatpush1.msra.mxu0 0.0
      %1307 = vmatprep.subr.mxu0 0.0
      %1308 = vmatpush1.msra.mxu0 0.0
      %1309 = vmatprep.subr.mxu0 0.0
      %1310 = vmatpush1.msra.mxu0 0.0
      %v1311 = vand.u32 %v188, 4294901760
      %1312 = vmatprep.subr.mxu0 %v1311
      %v1313 = vand.u32 %v185, 4294901760
      %1314 = vmatpush1.msra.mxu0 %v1313
      %v1315 = vand.u32 %v165, 4294901760
      %1316 = vmatprep.subr.mxu0 %v1315
      %v1317 = vand.u32 %v164, 4294901760
      %1318 = vmatpush1.msra.mxu0 %v1317
      %v1319 = vand.u32 %v161, 4294901760
      %1320 = vmatprep.subr.mxu0 %v1319
      %v1321 = vand.u32 %v160, 4294901760
      %1322 = vmatpush1.msra.mxu0 %v1321
      %v1323 = vand.u32 %v157, 4294901760
      %1324 = vmatprep.subr.mxu0 %v1323
      %v1325 = vand.u32 %v156, 4294901760
      %1326 = vmatpush1.msra.mxu0 %v1325
      %1327 = vmatprep.subr.mxu0 0.0
      %1328 = vmatpush2.msra.mxu0 0.0
      %1329 = vmatprep.subr.mxu0 0.0
      %1330 = vmatpush2.msra.mxu0 0.0
      %1331 = vmatprep.subr.mxu0 0.0
      %1332 = vmatpush2.msra.mxu0 0.0
      %1333 = vmatprep.subr.mxu0 0.0
      %1334 = vmatpush2.msra.mxu0 0.0
      %1335 = vmatprep.subr.mxu0 0.0
      %1336 = vmatpush2.msra.mxu0 0.0
      %1337 = vmatprep.subr.mxu0 0.0
      %1338 = vmatpush2.msra.mxu0 0.0
      %1339 = vmatprep.subr.mxu0 0.0
      %1340 = vmatpush2.msra.mxu0 0.0
      %1341 = vmatprep.subr.mxu0 0.0
      %1342 = vmatpush2.msra.mxu0 0.0
      %1343 = vmatprep.subr.mxu0 0.0
      %1344 = vmatpush2.msra.mxu0 0.0
      %1345 = vmatprep.subr.mxu0 0.0
      %1346 = vmatpush2.msra.mxu0 0.0
      %1347 = vmatprep.subr.mxu0 0.0
      %1348 = vmatpush2.msra.mxu0 0.0
      %1349 = vmatprep.subr.mxu0 0.0
      %1350 = vmatpush2.msra.mxu0 0.0
      %1351 = vmatprep.subr.mxu0 0.0
      %1352 = vmatpush2.msra.mxu0 0.0
      %1353 = vmatprep.subr.mxu0 0.0
      %1354 = vmatpush2.msra.mxu0 0.0
      %1355 = vmatprep.subr.mxu0 0.0
      %1356 = vmatpush2.msra.mxu0 0.0
      %1357 = vmatprep.subr.mxu0 0.0
      %1358 = vmatpush2.msra.mxu0 0.0
      %1359 = vmatprep.mubr.f32.mxu0 0.0
      %v1360 = vand.u32 %v172, 4294901760
      %1361 = vmatmul.mubr.f32.gmra.mxu0 %v1360
      %v1362 = vpop.f32.mrf.mxu0
      %v1363 = vadd.f32 %v1276, %v1362
      %v1364 = vpop.f32.mrf.mxu0
      %v1365 = vadd.f32 %v1278, %v1364
      %1366 = vmatprep.mubr.f32.mxu0 0.0
      %v1367 = vand.u32 %v175, 4294901760
      %1368 = vmatmul.mubr.f32.gmra.mxu0 %v1367
      %v1369 = vpop.f32.mrf.mxu0
      %v1370 = vadd.f32 %v1283, %v1369
      %v1371 = vpop.f32.mrf.mxu0
      %v1372 = vadd.f32 %v1285, %v1371
      %1373 = vdwg.mxu0
      %1374 = vst [vmem:[%s150] sm:$0xff] %v771
      %1375 = vst [vmem:[%s150 + $0x8] sm:$0xff] %v773
      %1376 = vst [vmem:[%s150 + $0x10] sm:$0xff] %v1363
      %1377 = vst [vmem:[%s150 + $0x18] sm:$0xff] %v1365
      %1378 = vst [vmem:[%s150 + $0x20] sm:$0x7f] %v778
      %1379 = vst [vmem:[%s150 + $0x28] sm:$0x7f] %v780
      %1380 = vst [vmem:[%s150 + $0x30] sm:$0x7f] %v1370
      %1381 = vst [vmem:[%s150 + $0x38] sm:$0x7f] %v1372
      %s1382 = scalar_lea.vmem %s143, 128
      %v1383 = vld [vmem:[%s1382] sm:$0xff]
      %v1384 = vld [vmem:[%s1382 + $0x8] sm:$0xff]
      %v1385 = vld [vmem:[%s1382 + $0x10] sm:$0xff]
      %v1386 = vld [vmem:[%s1382 + $0x18] sm:$0xff]
      %v1387 = vld [vmem:[%s1382 + $0x20] sm:$0xff]
      %v1388 = vld [vmem:[%s1382 + $0x28] sm:$0xff]
      %v1389 = vld [vmem:[%s1382 + $0x30] sm:$0xff]
      %v1390 = vld [vmem:[%s1382 + $0x38] sm:$0xff]
      %v1391 = vld [vmem:[%s1382 + $0x40] sm:$0xff]
      %v1392 = vld [vmem:[%s1382 + $0x48] sm:$0xff]
      %v1393 = vld [vmem:[%s1382 + $0x50] sm:$0xff]
      %v1394 = vld [vmem:[%s1382 + $0x58] sm:$0xff]
      %v1395 = vld [vmem:[%s1382 + $0x60] sm:$0x3f]
      %v1396 = vld [vmem:[%s1382 + $0x68] sm:$0x3f]
      %v1397 = vld [vmem:[%s1382 + $0x70] sm:$0x3f]
      %v1398 = vld [vmem:[%s1382 + $0x78] sm:$0x3f]
      %v1400 = vsel %vm177, %v1395, 0
      %v1403 = vsel %vm177, %v1396, 0
      %v1406 = vsel %vm177, %v1397, 0
      %v1409 = vsel %vm177, %v1398, 0
      %1411 = vmatprep.subr.mxu0 0.0
      %1412 = vmatpush1.msra.mxu0 0.0
      %1413 = vmatprep.subr.mxu0 0.0
      %1414 = vmatpush1.msra.mxu0 0.0
      %1415 = vmatprep.subr.mxu0 0.0
      %1416 = vmatpush1.msra.mxu0 0.0
      %1417 = vmatprep.subr.mxu0 0.0
      %1418 = vmatpush1.msra.mxu0 0.0
      %1419 = vmatprep.subr.mxu0 0.0
      %1420 = vmatpush1.msra.mxu0 0.0
      %1421 = vmatprep.subr.mxu0 0.0
      %1422 = vmatpush1.msra.mxu0 0.0
      %1423 = vmatprep.subr.mxu0 0.0
      %1424 = vmatpush1.msra.mxu0 0.0
      %1425 = vmatprep.subr.mxu0 0.0
      %1426 = vmatpush1.msra.mxu0 0.0
      %1427 = vmatprep.subr.mxu0 0.0
      %1428 = vmatpush1.msra.mxu0 0.0
      %1429 = vmatprep.subr.mxu0 0.0
      %1430 = vmatpush1.msra.mxu0 0.0
      %1431 = vmatprep.subr.mxu0 0.0
      %1432 = vmatpush1.msra.mxu0 0.0
      %1433 = vmatprep.subr.mxu0 0.0
      %1434 = vmatpush1.msra.mxu0 0.0
      %v1435 = vand.u32 %v1403, 4294901760
      %1436 = vmatprep.subr.mxu0 %v1435
      %v1437 = vand.u32 %v1400, 4294901760
      %1438 = vmatpush1.msra.mxu0 %v1437
      %v1439 = vand.u32 %v1392, 4294901760
      %1440 = vmatprep.subr.mxu0 %v1439
      %v1441 = vand.u32 %v1391, 4294901760
      %1442 = vmatpush1.msra.mxu0 %v1441
      %v1443 = vand.u32 %v1388, 4294901760
      %1444 = vmatprep.subr.mxu0 %v1443
      %v1445 = vand.u32 %v1387, 4294901760
      %1446 = vmatpush1.msra.mxu0 %v1445
      %v1447 = vand.u32 %v1384, 4294901760
      %1448 = vmatprep.subr.mxu0 %v1447
      %v1449 = vand.u32 %v1383, 4294901760
      %1450 = vmatpush1.msra.mxu0 %v1449
      %1451 = vmatprep.subr.mxu0 0.0
      %1452 = vmatpush2.msra.mxu0 0.0
      %1453 = vmatprep.subr.mxu0 0.0
      %1454 = vmatpush2.msra.mxu0 0.0
      %1455 = vmatprep.subr.mxu0 0.0
      %1456 = vmatpush2.msra.mxu0 0.0
      %1457 = vmatprep.subr.mxu0 0.0
      %1458 = vmatpush2.msra.mxu0 0.0
      %1459 = vmatprep.subr.mxu0 0.0
      %1460 = vmatpush2.msra.mxu0 0.0
      %1461 = vmatprep.subr.mxu0 0.0
      %1462 = vmatpush2.msra.mxu0 0.0
      %1463 = vmatprep.subr.mxu0 0.0
      %1464 = vmatpush2.msra.mxu0 0.0
      %1465 = vmatprep.subr.mxu0 0.0
      %1466 = vmatpush2.msra.mxu0 0.0
      %1467 = vmatprep.subr.mxu0 0.0
      %1468 = vmatpush2.msra.mxu0 0.0
      %1469 = vmatprep.subr.mxu0 0.0
      %1470 = vmatpush2.msra.mxu0 0.0
      %1471 = vmatprep.subr.mxu0 0.0
      %1472 = vmatpush2.msra.mxu0 0.0
      %1473 = vmatprep.subr.mxu0 0.0
      %1474 = vmatpush2.msra.mxu0 0.0
      %1475 = vmatprep.subr.mxu0 0.0
      %1476 = vmatpush2.msra.mxu0 0.0
      %1477 = vmatprep.subr.mxu0 0.0
      %1478 = vmatpush2.msra.mxu0 0.0
      %1479 = vmatprep.subr.mxu0 0.0
      %1480 = vmatpush2.msra.mxu0 0.0
      %1481 = vmatprep.subr.mxu0 0.0
      %1482 = vmatpush2.msra.mxu0 0.0
      %1483 = vmatprep.mubr.f32.mxu0 0.0
      %v1484 = vand.u32 %v172, 4294901760
      %v1485 = vsub.f32 %v172, %v1484
      %v1486 = vand.u32 %v1485, 4294901760
      %v1487 = vsub.f32 %v1485, %v1486
      %v1488 = vand.u32 %v1487, 4294901760
      %1489 = vmatmul.mubr.f32.gmra.mxu0 %v1488
      %v1490 = vpop.f32.mrf.mxu0
      %v1491 = vadd.f32 0.0, %v1490
      %v1492 = vpop.f32.mrf.mxu0
      %v1493 = vadd.f32 0.0, %v1492
      %1494 = vmatprep.mubr.f32.mxu0 0.0
      %v1495 = vand.u32 %v175, 4294901760
      %v1496 = vsub.f32 %v175, %v1495
      %v1497 = vand.u32 %v1496, 4294901760
      %v1498 = vsub.f32 %v1496, %v1497
      %v1499 = vand.u32 %v1498, 4294901760
      %1500 = vmatmul.mubr.f32.gmra.mxu0 %v1499
      %v1501 = vpop.f32.mrf.mxu0
      %v1502 = vadd.f32 0.0, %v1501
      %v1503 = vpop.f32.mrf.mxu0
      %v1504 = vadd.f32 0.0, %v1503
      %1505 = vdwg.mxu0
      %1506 = vmatprep.subr.mxu0 0.0
      %1507 = vmatpush1.msra.mxu0 0.0
      %1508 = vmatprep.subr.mxu0 0.0
      %1509 = vmatpush1.msra.mxu0 0.0
      %1510 = vmatprep.subr.mxu0 0.0
      %1511 = vmatpush1.msra.mxu0 0.0
      %1512 = vmatprep.subr.mxu0 0.0
      %1513 = vmatpush1.msra.mxu0 0.0
      %1514 = vmatprep.subr.mxu0 0.0
      %1515 = vmatpush1.msra.mxu0 0.0
      %1516 = vmatprep.subr.mxu0 0.0
      %1517 = vmatpush1.msra.mxu0 0.0
      %1518 = vmatprep.subr.mxu0 0.0
      %1519 = vmatpush1.msra.mxu0 0.0
      %1520 = vmatprep.subr.mxu0 0.0
      %1521 = vmatpush1.msra.mxu0 0.0
      %1522 = vmatprep.subr.mxu0 0.0
      %1523 = vmatpush1.msra.mxu0 0.0
      %1524 = vmatprep.subr.mxu0 0.0
      %1525 = vmatpush1.msra.mxu0 0.0
      %1526 = vmatprep.subr.mxu0 0.0
      %1527 = vmatpush1.msra.mxu0 0.0
      %1528 = vmatprep.subr.mxu0 0.0
      %1529 = vmatpush1.msra.mxu0 0.0
      %v1530 = vand.u32 %v1403, 4294901760
      %v1531 = vsub.f32 %v1403, %v1530
      %v1532 = vand.u32 %v1531, 4294901760
      %v1533 = vsub.f32 %v1531, %v1532
      %v1534 = vand.u32 %v1533, 4294901760
      %1535 = vmatprep.subr.mxu0 %v1534
      %v1536 = vand.u32 %v1400, 4294901760
      %v1537 = vsub.f32 %v1400, %v1536
      %v1538 = vand.u32 %v1537, 4294901760
      %v1539 = vsub.f32 %v1537, %v1538
      %v1540 = vand.u32 %v1539, 4294901760
      %1541 = vmatpush1.msra.mxu0 %v1540
      %v1542 = vand.u32 %v1392, 4294901760
      %v1543 = vsub.f32 %v1392, %v1542
      %v1544 = vand.u32 %v1543, 4294901760
      %v1545 = vsub.f32 %v1543, %v1544
      %v1546 = vand.u32 %v1545, 4294901760
      %1547 = vmatprep.subr.mxu0 %v1546
      %v1548 = vand.u32 %v1391, 4294901760
      %v1549 = vsub.f32 %v1391, %v1548
      %v1550 = vand.u32 %v1549, 4294901760
      %v1551 = vsub.f32 %v1549, %v1550
      %v1552 = vand.u32 %v1551, 4294901760
      %1553 = vmatpush1.msra.mxu0 %v1552
      %v1554 = vand.u32 %v1388, 4294901760
      %v1555 = vsub.f32 %v1388, %v1554
      %v1556 = vand.u32 %v1555, 4294901760
      %v1557 = vsub.f32 %v1555, %v1556
      %v1558 = vand.u32 %v1557, 4294901760
      %1559 = vmatprep.subr.mxu0 %v1558
      %v1560 = vand.u32 %v1387, 4294901760
      %v1561 = vsub.f32 %v1387, %v1560
      %v1562 = vand.u32 %v1561, 4294901760
      %v1563 = vsub.f32 %v1561, %v1562
      %v1564 = vand.u32 %v1563, 4294901760
      %1565 = vmatpush1.msra.mxu0 %v1564
      %v1566 = vand.u32 %v1384, 4294901760
      %v1567 = vsub.f32 %v1384, %v1566
      %v1568 = vand.u32 %v1567, 4294901760
      %v1569 = vsub.f32 %v1567, %v1568
      %v1570 = vand.u32 %v1569, 4294901760
      %1571 = vmatprep.subr.mxu0 %v1570
      %v1572 = vand.u32 %v1383, 4294901760
      %v1573 = vsub.f32 %v1383, %v1572
      %v1574 = vand.u32 %v1573, 4294901760
      %v1575 = vsub.f32 %v1573, %v1574
      %v1576 = vand.u32 %v1575, 4294901760
      %1577 = vmatpush1.msra.mxu0 %v1576
      %1578 = vmatprep.subr.mxu0 0.0
      %1579 = vmatpush2.msra.mxu0 0.0
      %1580 = vmatprep.subr.mxu0 0.0
      %1581 = vmatpush2.msra.mxu0 0.0
      %1582 = vmatprep.subr.mxu0 0.0
      %1583 = vmatpush2.msra.mxu0 0.0
      %1584 = vmatprep.subr.mxu0 0.0
      %1585 = vmatpush2.msra.mxu0 0.0
      %1586 = vmatprep.subr.mxu0 0.0
      %1587 = vmatpush2.msra.mxu0 0.0
      %1588 = vmatprep.subr.mxu0 0.0
      %1589 = vmatpush2.msra.mxu0 0.0
      %1590 = vmatprep.subr.mxu0 0.0
      %1591 = vmatpush2.msra.mxu0 0.0
      %1592 = vmatprep.subr.mxu0 0.0
      %1593 = vmatpush2.msra.mxu0 0.0
      %1594 = vmatprep.subr.mxu0 0.0
      %1595 = vmatpush2.msra.mxu0 0.0
      %1596 = vmatprep.subr.mxu0 0.0
      %1597 = vmatpush2.msra.mxu0 0.0
      %1598 = vmatprep.subr.mxu0 0.0
      %1599 = vmatpush2.msra.mxu0 0.0
      %1600 = vmatprep.subr.mxu0 0.0
      %1601 = vmatpush2.msra.mxu0 0.0
      %1602 = vmatprep.subr.mxu0 0.0
      %1603 = vmatpush2.msra.mxu0 0.0
      %1604 = vmatprep.subr.mxu0 0.0
      %1605 = vmatpush2.msra.mxu0 0.0
      %1606 = vmatprep.subr.mxu0 0.0
      %1607 = vmatpush2.msra.mxu0 0.0
      %1608 = vmatprep.subr.mxu0 0.0
      %1609 = vmatpush2.msra.mxu0 0.0
      %1610 = vmatprep.mubr.f32.mxu0 0.0
      %v1611 = vand.u32 %v172, 4294901760
      %1612 = vmatmul.mubr.f32.gmra.mxu0 %v1611
      %v1613 = vpop.f32.mrf.mxu0
      %v1614 = vadd.f32 %v1491, %v1613
      %v1615 = vpop.f32.mrf.mxu0
      %v1616 = vadd.f32 %v1493, %v1615
      %1617 = vmatprep.mubr.f32.mxu0 0.0
      %v1618 = vand.u32 %v175, 4294901760
      %1619 = vmatmul.mubr.f32.gmra.mxu0 %v1618
      %v1620 = vpop.f32.mrf.mxu0
      %v1621 = vadd.f32 %v1502, %v1620
      %v1622 = vpop.f32.mrf.mxu0
      %v1623 = vadd.f32 %v1504, %v1622
      %1624 = vdwg.mxu0
      %1625 = vmatprep.subr.mxu0 0.0
      %1626 = vmatpush1.msra.mxu0 0.0
      %1627 = vmatprep.subr.mxu0 0.0
      %1628 = vmatpush1.msra.mxu0 0.0
      %1629 = vmatprep.subr.mxu0 0.0
      %1630 = vmatpush1.msra.mxu0 0.0
      %1631 = vmatprep.subr.mxu0 0.0
      %1632 = vmatpush1.msra.mxu0 0.0
      %1633 = vmatprep.subr.mxu0 0.0
      %1634 = vmatpush1.msra.mxu0 0.0
      %1635 = vmatprep.subr.mxu0 0.0
      %1636 = vmatpush1.msra.mxu0 0.0
      %1637 = vmatprep.subr.mxu0 0.0
      %1638 = vmatpush1.msra.mxu0 0.0
      %1639 = vmatprep.subr.mxu0 0.0
      %1640 = vmatpush1.msra.mxu0 0.0
      %1641 = vmatprep.subr.mxu0 0.0
      %1642 = vmatpush1.msra.mxu0 0.0
      %1643 = vmatprep.subr.mxu0 0.0
      %1644 = vmatpush1.msra.mxu0 0.0
      %1645 = vmatprep.subr.mxu0 0.0
      %1646 = vmatpush1.msra.mxu0 0.0
      %1647 = vmatprep.subr.mxu0 0.0
      %1648 = vmatpush1.msra.mxu0 0.0
      %v1649 = vand.u32 %v1403, 4294901760
      %v1650 = vsub.f32 %v1403, %v1649
      %1651 = vmatprep.subr.mxu0 %v1650
      %v1652 = vand.u32 %v1400, 4294901760
      %v1653 = vsub.f32 %v1400, %v1652
      %1654 = vmatpush1.msra.mxu0 %v1653
      %v1655 = vand.u32 %v1392, 4294901760
      %v1656 = vsub.f32 %v1392, %v1655
      %1657 = vmatprep.subr.mxu0 %v1656
      %v1658 = vand.u32 %v1391, 4294901760
      %v1659 = vsub.f32 %v1391, %v1658
      %1660 = vmatpush1.msra.mxu0 %v1659
      %v1661 = vand.u32 %v1388, 4294901760
      %v1662 = vsub.f32 %v1388, %v1661
      %1663 = vmatprep.subr.mxu0 %v1662
      %v1664 = vand.u32 %v1387, 4294901760
      %v1665 = vsub.f32 %v1387, %v1664
      %1666 = vmatpush1.msra.mxu0 %v1665
      %v1667 = vand.u32 %v1384, 4294901760
      %v1668 = vsub.f32 %v1384, %v1667
      %1669 = vmatprep.subr.mxu0 %v1668
      %v1670 = vand.u32 %v1383, 4294901760
      %v1671 = vsub.f32 %v1383, %v1670
      %1672 = vmatpush1.msra.mxu0 %v1671
      %1673 = vmatprep.subr.mxu0 0.0
      %1674 = vmatpush2.msra.mxu0 0.0
      %1675 = vmatprep.subr.mxu0 0.0
      %1676 = vmatpush2.msra.mxu0 0.0
      %1677 = vmatprep.subr.mxu0 0.0
      %1678 = vmatpush2.msra.mxu0 0.0
      %1679 = vmatprep.subr.mxu0 0.0
      %1680 = vmatpush2.msra.mxu0 0.0
      %1681 = vmatprep.subr.mxu0 0.0
      %1682 = vmatpush2.msra.mxu0 0.0
      %1683 = vmatprep.subr.mxu0 0.0
      %1684 = vmatpush2.msra.mxu0 0.0
      %1685 = vmatprep.subr.mxu0 0.0
      %1686 = vmatpush2.msra.mxu0 0.0
      %1687 = vmatprep.subr.mxu0 0.0
      %1688 = vmatpush2.msra.mxu0 0.0
      %1689 = vmatprep.subr.mxu0 0.0
      %1690 = vmatpush2.msra.mxu0 0.0
      %1691 = vmatprep.subr.mxu0 0.0
      %1692 = vmatpush2.msra.mxu0 0.0
      %1693 = vmatprep.subr.mxu0 0.0
      %1694 = vmatpush2.msra.mxu0 0.0
      %1695 = vmatprep.subr.mxu0 0.0
      %1696 = vmatpush2.msra.mxu0 0.0
      %1697 = vmatprep.subr.mxu0 0.0
      %1698 = vmatpush2.msra.mxu0 0.0
      %1699 = vmatprep.subr.mxu0 0.0
      %1700 = vmatpush2.msra.mxu0 0.0
      %1701 = vmatprep.subr.mxu0 0.0
      %1702 = vmatpush2.msra.mxu0 0.0
      %1703 = vmatprep.subr.mxu0 0.0
      %1704 = vmatpush2.msra.mxu0 0.0
      %1705 = vmatprep.mubr.f32.mxu0 0.0
      %v1706 = vand.u32 %v172, 4294901760
      %v1707 = vsub.f32 %v172, %v1706
      %1708 = vmatmul.mubr.f32.gmra.mxu0 %v1707
      %v1709 = vpop.f32.mrf.mxu0
      %v1710 = vadd.f32 %v1614, %v1709
      %v1711 = vpop.f32.mrf.mxu0
      %v1712 = vadd.f32 %v1616, %v1711
      %1713 = vmatprep.mubr.f32.mxu0 0.0
      %v1714 = vand.u32 %v175, 4294901760
      %v1715 = vsub.f32 %v175, %v1714
      %1716 = vmatmul.mubr.f32.gmra.mxu0 %v1715
      %v1717 = vpop.f32.mrf.mxu0
      %v1718 = vadd.f32 %v1621, %v1717
      %v1719 = vpop.f32.mrf.mxu0
      %v1720 = vadd.f32 %v1623, %v1719
      %1721 = vdwg.mxu0
      %1722 = vmatprep.subr.mxu0 0.0
      %1723 = vmatpush1.msra.mxu0 0.0
      %1724 = vmatprep.subr.mxu0 0.0
      %1725 = vmatpush1.msra.mxu0 0.0
      %1726 = vmatprep.subr.mxu0 0.0
      %1727 = vmatpush1.msra.mxu0 0.0
      %1728 = vmatprep.subr.mxu0 0.0
      %1729 = vmatpush1.msra.mxu0 0.0
      %1730 = vmatprep.subr.mxu0 0.0
      %1731 = vmatpush1.msra.mxu0 0.0
      %1732 = vmatprep.subr.mxu0 0.0
      %1733 = vmatpush1.msra.mxu0 0.0
      %1734 = vmatprep.subr.mxu0 0.0
      %1735 = vmatpush1.msra.mxu0 0.0
      %1736 = vmatprep.subr.mxu0 0.0
      %1737 = vmatpush1.msra.mxu0 0.0
      %1738 = vmatprep.subr.mxu0 0.0
      %1739 = vmatpush1.msra.mxu0 0.0
      %1740 = vmatprep.subr.mxu0 0.0
      %1741 = vmatpush1.msra.mxu0 0.0
      %1742 = vmatprep.subr.mxu0 0.0
      %1743 = vmatpush1.msra.mxu0 0.0
      %1744 = vmatprep.subr.mxu0 0.0
      %1745 = vmatpush1.msra.mxu0 0.0
      %v1746 = vand.u32 %v1403, 4294901760
      %1747 = vmatprep.subr.mxu0 %v1746
      %v1748 = vand.u32 %v1400, 4294901760
      %1749 = vmatpush1.msra.mxu0 %v1748
      %v1750 = vand.u32 %v1392, 4294901760
      %1751 = vmatprep.subr.mxu0 %v1750
      %v1752 = vand.u32 %v1391, 4294901760
      %1753 = vmatpush1.msra.mxu0 %v1752
      %v1754 = vand.u32 %v1388, 4294901760
      %1755 = vmatprep.subr.mxu0 %v1754
      %v1756 = vand.u32 %v1387, 4294901760
      %1757 = vmatpush1.msra.mxu0 %v1756
      %v1758 = vand.u32 %v1384, 4294901760
      %1759 = vmatprep.subr.mxu0 %v1758
      %v1760 = vand.u32 %v1383, 4294901760
      %1761 = vmatpush1.msra.mxu0 %v1760
      %1762 = vmatprep.subr.mxu0 0.0
      %1763 = vmatpush2.msra.mxu0 0.0
      %1764 = vmatprep.subr.mxu0 0.0
      %1765 = vmatpush2.msra.mxu0 0.0
      %1766 = vmatprep.subr.mxu0 0.0
      %1767 = vmatpush2.msra.mxu0 0.0
      %1768 = vmatprep.subr.mxu0 0.0
      %1769 = vmatpush2.msra.mxu0 0.0
      %1770 = vmatprep.subr.mxu0 0.0
      %1771 = vmatpush2.msra.mxu0 0.0
      %1772 = vmatprep.subr.mxu0 0.0
      %1773 = vmatpush2.msra.mxu0 0.0
      %1774 = vmatprep.subr.mxu0 0.0
      %1775 = vmatpush2.msra.mxu0 0.0
      %1776 = vmatprep.subr.mxu0 0.0
      %1777 = vmatpush2.msra.mxu0 0.0
      %1778 = vmatprep.subr.mxu0 0.0
      %1779 = vmatpush2.msra.mxu0 0.0
      %1780 = vmatprep.subr.mxu0 0.0
      %1781 = vmatpush2.msra.mxu0 0.0
      %1782 = vmatprep.subr.mxu0 0.0
      %1783 = vmatpush2.msra.mxu0 0.0
      %1784 = vmatprep.subr.mxu0 0.0
      %1785 = vmatpush2.msra.mxu0 0.0
      %1786 = vmatprep.subr.mxu0 0.0
      %1787 = vmatpush2.msra.mxu0 0.0
      %1788 = vmatprep.subr.mxu0 0.0
      %1789 = vmatpush2.msra.mxu0 0.0
      %1790 = vmatprep.subr.mxu0 0.0
      %1791 = vmatpush2.msra.mxu0 0.0
      %1792 = vmatprep.subr.mxu0 0.0
      %1793 = vmatpush2.msra.mxu0 0.0
      %1794 = vmatprep.mubr.f32.mxu0 0.0
      %v1795 = vand.u32 %v172, 4294901760
      %v1796 = vsub.f32 %v172, %v1795
      %v1797 = vand.u32 %v1796, 4294901760
      %1798 = vmatmul.mubr.f32.gmra.mxu0 %v1797
      %v1799 = vpop.f32.mrf.mxu0
      %v1800 = vadd.f32 %v1710, %v1799
      %v1801 = vpop.f32.mrf.mxu0
      %v1802 = vadd.f32 %v1712, %v1801
      %1803 = vmatprep.mubr.f32.mxu0 0.0
      %v1804 = vand.u32 %v175, 4294901760
      %v1805 = vsub.f32 %v175, %v1804
      %v1806 = vand.u32 %v1805, 4294901760
      %1807 = vmatmul.mubr.f32.gmra.mxu0 %v1806
      %v1808 = vpop.f32.mrf.mxu0
      %v1809 = vadd.f32 %v1718, %v1808
      %v1810 = vpop.f32.mrf.mxu0
      %v1811 = vadd.f32 %v1720, %v1810
      %1812 = vdwg.mxu0
      %1813 = vmatprep.subr.mxu0 0.0
      %1814 = vmatpush1.msra.mxu0 0.0
      %1815 = vmatprep.subr.mxu0 0.0
      %1816 = vmatpush1.msra.mxu0 0.0
      %1817 = vmatprep.subr.mxu0 0.0
      %1818 = vmatpush1.msra.mxu0 0.0
      %1819 = vmatprep.subr.mxu0 0.0
      %1820 = vmatpush1.msra.mxu0 0.0
      %1821 = vmatprep.subr.mxu0 0.0
      %1822 = vmatpush1.msra.mxu0 0.0
      %1823 = vmatprep.subr.mxu0 0.0
      %1824 = vmatpush1.msra.mxu0 0.0
      %1825 = vmatprep.subr.mxu0 0.0
      %1826 = vmatpush1.msra.mxu0 0.0
      %1827 = vmatprep.subr.mxu0 0.0
      %1828 = vmatpush1.msra.mxu0 0.0
      %1829 = vmatprep.subr.mxu0 0.0
      %1830 = vmatpush1.msra.mxu0 0.0
      %1831 = vmatprep.subr.mxu0 0.0
      %1832 = vmatpush1.msra.mxu0 0.0
      %1833 = vmatprep.subr.mxu0 0.0
      %1834 = vmatpush1.msra.mxu0 0.0
      %1835 = vmatprep.subr.mxu0 0.0
      %1836 = vmatpush1.msra.mxu0 0.0
      %v1837 = vand.u32 %v1403, 4294901760
      %v1838 = vsub.f32 %v1403, %v1837
      %v1839 = vand.u32 %v1838, 4294901760
      %1840 = vmatprep.subr.mxu0 %v1839
      %v1841 = vand.u32 %v1400, 4294901760
      %v1842 = vsub.f32 %v1400, %v1841
      %v1843 = vand.u32 %v1842, 4294901760
      %1844 = vmatpush1.msra.mxu0 %v1843
      %v1845 = vand.u32 %v1392, 4294901760
      %v1846 = vsub.f32 %v1392, %v1845
      %v1847 = vand.u32 %v1846, 4294901760
      %1848 = vmatprep.subr.mxu0 %v1847
      %v1849 = vand.u32 %v1391, 4294901760
      %v1850 = vsub.f32 %v1391, %v1849
      %v1851 = vand.u32 %v1850, 4294901760
      %1852 = vmatpush1.msra.mxu0 %v1851
      %v1853 = vand.u32 %v1388, 4294901760
      %v1854 = vsub.f32 %v1388, %v1853
      %v1855 = vand.u32 %v1854, 4294901760
      %1856 = vmatprep.subr.mxu0 %v1855
      %v1857 = vand.u32 %v1387, 4294901760
      %v1858 = vsub.f32 %v1387, %v1857
      %v1859 = vand.u32 %v1858, 4294901760
      %1860 = vmatpush1.msra.mxu0 %v1859
      %v1861 = vand.u32 %v1384, 4294901760
      %v1862 = vsub.f32 %v1384, %v1861
      %v1863 = vand.u32 %v1862, 4294901760
      %1864 = vmatprep.subr.mxu0 %v1863
      %v1865 = vand.u32 %v1383, 4294901760
      %v1866 = vsub.f32 %v1383, %v1865
      %v1867 = vand.u32 %v1866, 4294901760
      %1868 = vmatpush1.msra.mxu0 %v1867
      %1869 = vmatprep.subr.mxu0 0.0
      %1870 = vmatpush2.msra.mxu0 0.0
      %1871 = vmatprep.subr.mxu0 0.0
      %1872 = vmatpush2.msra.mxu0 0.0
      %1873 = vmatprep.subr.mxu0 0.0
      %1874 = vmatpush2.msra.mxu0 0.0
      %1875 = vmatprep.subr.mxu0 0.0
      %1876 = vmatpush2.msra.mxu0 0.0
      %1877 = vmatprep.subr.mxu0 0.0
      %1878 = vmatpush2.msra.mxu0 0.0
      %1879 = vmatprep.subr.mxu0 0.0
      %1880 = vmatpush2.msra.mxu0 0.0
      %1881 = vmatprep.subr.mxu0 0.0
      %1882 = vmatpush2.msra.mxu0 0.0
      %1883 = vmatprep.subr.mxu0 0.0
      %1884 = vmatpush2.msra.mxu0 0.0
      %1885 = vmatprep.subr.mxu0 0.0
      %1886 = vmatpush2.msra.mxu0 0.0
      %1887 = vmatprep.subr.mxu0 0.0
      %1888 = vmatpush2.msra.mxu0 0.0
      %1889 = vmatprep.subr.mxu0 0.0
      %1890 = vmatpush2.msra.mxu0 0.0
      %1891 = vmatprep.subr.mxu0 0.0
      %1892 = vmatpush2.msra.mxu0 0.0
      %1893 = vmatprep.subr.mxu0 0.0
      %1894 = vmatpush2.msra.mxu0 0.0
      %1895 = vmatprep.subr.mxu0 0.0
      %1896 = vmatpush2.msra.mxu0 0.0
      %1897 = vmatprep.subr.mxu0 0.0
      %1898 = vmatpush2.msra.mxu0 0.0
      %1899 = vmatprep.subr.mxu0 0.0
      %1900 = vmatpush2.msra.mxu0 0.0
      %1901 = vmatprep.mubr.f32.mxu0 0.0
      %v1902 = vand.u32 %v172, 4294901760
      %1903 = vmatmul.mubr.f32.gmra.mxu0 %v1902
      %v1904 = vpop.f32.mrf.mxu0
      %v1905 = vadd.f32 %v1800, %v1904
      %v1906 = vpop.f32.mrf.mxu0
      %v1907 = vadd.f32 %v1802, %v1906
      %1908 = vmatprep.mubr.f32.mxu0 0.0
      %v1909 = vand.u32 %v175, 4294901760
      %1910 = vmatmul.mubr.f32.gmra.mxu0 %v1909
      %v1911 = vpop.f32.mrf.mxu0
      %v1912 = vadd.f32 %v1809, %v1911
      %v1913 = vpop.f32.mrf.mxu0
      %v1914 = vadd.f32 %v1811, %v1913
      %1915 = vdwg.mxu0
      %1916 = vmatprep.subr.mxu0 0.0
      %1917 = vmatpush1.msra.mxu0 0.0
      %1918 = vmatprep.subr.mxu0 0.0
      %1919 = vmatpush1.msra.mxu0 0.0
      %1920 = vmatprep.subr.mxu0 0.0
      %1921 = vmatpush1.msra.mxu0 0.0
      %1922 = vmatprep.subr.mxu0 0.0
      %1923 = vmatpush1.msra.mxu0 0.0
      %1924 = vmatprep.subr.mxu0 0.0
      %1925 = vmatpush1.msra.mxu0 0.0
      %1926 = vmatprep.subr.mxu0 0.0
      %1927 = vmatpush1.msra.mxu0 0.0
      %1928 = vmatprep.subr.mxu0 0.0
      %1929 = vmatpush1.msra.mxu0 0.0
      %1930 = vmatprep.subr.mxu0 0.0
      %1931 = vmatpush1.msra.mxu0 0.0
      %1932 = vmatprep.subr.mxu0 0.0
      %1933 = vmatpush1.msra.mxu0 0.0
      %1934 = vmatprep.subr.mxu0 0.0
      %1935 = vmatpush1.msra.mxu0 0.0
      %1936 = vmatprep.subr.mxu0 0.0
      %1937 = vmatpush1.msra.mxu0 0.0
      %1938 = vmatprep.subr.mxu0 0.0
      %1939 = vmatpush1.msra.mxu0 0.0
      %v1940 = vand.u32 %v1403, 4294901760
      %1941 = vmatprep.subr.mxu0 %v1940
      %v1942 = vand.u32 %v1400, 4294901760
      %1943 = vmatpush1.msra.mxu0 %v1942
      %v1944 = vand.u32 %v1392, 4294901760
      %1945 = vmatprep.subr.mxu0 %v1944
      %v1946 = vand.u32 %v1391, 4294901760
      %1947 = vmatpush1.msra.mxu0 %v1946
      %v1948 = vand.u32 %v1388, 4294901760
      %1949 = vmatprep.subr.mxu0 %v1948
      %v1950 = vand.u32 %v1387, 4294901760
      %1951 = vmatpush1.msra.mxu0 %v1950
      %v1952 = vand.u32 %v1384, 4294901760
      %1953 = vmatprep.subr.mxu0 %v1952
      %v1954 = vand.u32 %v1383, 4294901760
      %1955 = vmatpush1.msra.mxu0 %v1954
      %1956 = vmatprep.subr.mxu0 0.0
      %1957 = vmatpush2.msra.mxu0 0.0
      %1958 = vmatprep.subr.mxu0 0.0
      %1959 = vmatpush2.msra.mxu0 0.0
      %1960 = vmatprep.subr.mxu0 0.0
      %1961 = vmatpush2.msra.mxu0 0.0
      %1962 = vmatprep.subr.mxu0 0.0
      %1963 = vmatpush2.msra.mxu0 0.0
      %1964 = vmatprep.subr.mxu0 0.0
      %1965 = vmatpush2.msra.mxu0 0.0
      %1966 = vmatprep.subr.mxu0 0.0
      %1967 = vmatpush2.msra.mxu0 0.0
      %1968 = vmatprep.subr.mxu0 0.0
      %1969 = vmatpush2.msra.mxu0 0.0
      %1970 = vmatprep.subr.mxu0 0.0
      %1971 = vmatpush2.msra.mxu0 0.0
      %1972 = vmatprep.subr.mxu0 0.0
      %1973 = vmatpush2.msra.mxu0 0.0
      %1974 = vmatprep.subr.mxu0 0.0
      %1975 = vmatpush2.msra.mxu0 0.0
      %1976 = vmatprep.subr.mxu0 0.0
      %1977 = vmatpush2.msra.mxu0 0.0
      %1978 = vmatprep.subr.mxu0 0.0
      %1979 = vmatpush2.msra.mxu0 0.0
      %1980 = vmatprep.subr.mxu0 0.0
      %1981 = vmatpush2.msra.mxu0 0.0
      %1982 = vmatprep.subr.mxu0 0.0
      %1983 = vmatpush2.msra.mxu0 0.0
      %1984 = vmatprep.subr.mxu0 0.0
      %1985 = vmatpush2.msra.mxu0 0.0
      %1986 = vmatprep.subr.mxu0 0.0
      %1987 = vmatpush2.msra.mxu0 0.0
      %1988 = vmatprep.mubr.f32.mxu0 0.0
      %v1989 = vand.u32 %v172, 4294901760
      %1990 = vmatmul.mubr.f32.gmra.mxu0 %v1989
      %v1991 = vpop.f32.mrf.mxu0
      %v1992 = vadd.f32 %v1905, %v1991
      %v1993 = vpop.f32.mrf.mxu0
      %v1994 = vadd.f32 %v1907, %v1993
      %1995 = vmatprep.mubr.f32.mxu0 0.0
      %v1996 = vand.u32 %v175, 4294901760
      %1997 = vmatmul.mubr.f32.gmra.mxu0 %v1996
      %v1998 = vpop.f32.mrf.mxu0
      %v1999 = vadd.f32 %v1912, %v1998
      %v2000 = vpop.f32.mrf.mxu0
      %v2001 = vadd.f32 %v1914, %v2000
      %2002 = vdwg.mxu0
      %2003 = vmatprep.subr.mxu0 0.0
      %2004 = vmatpush1.msra.mxu0 0.0
      %2005 = vmatprep.subr.mxu0 0.0
      %2006 = vmatpush1.msra.mxu0 0.0
      %2007 = vmatprep.subr.mxu0 0.0
      %2008 = vmatpush1.msra.mxu0 0.0
      %2009 = vmatprep.subr.mxu0 0.0
      %2010 = vmatpush1.msra.mxu0 0.0
      %2011 = vmatprep.subr.mxu0 0.0
      %2012 = vmatpush1.msra.mxu0 0.0
      %2013 = vmatprep.subr.mxu0 0.0
      %2014 = vmatpush1.msra.mxu0 0.0
      %2015 = vmatprep.subr.mxu0 0.0
      %2016 = vmatpush1.msra.mxu0 0.0
      %2017 = vmatprep.subr.mxu0 0.0
      %2018 = vmatpush1.msra.mxu0 0.0
      %2019 = vmatprep.subr.mxu0 0.0
      %2020 = vmatpush1.msra.mxu0 0.0
      %2021 = vmatprep.subr.mxu0 0.0
      %2022 = vmatpush1.msra.mxu0 0.0
      %2023 = vmatprep.subr.mxu0 0.0
      %2024 = vmatpush1.msra.mxu0 0.0
      %2025 = vmatprep.subr.mxu0 0.0
      %2026 = vmatpush1.msra.mxu0 0.0
      %v2027 = vand.u32 %v1409, 4294901760
      %2028 = vmatprep.subr.mxu0 %v2027
      %v2029 = vand.u32 %v1406, 4294901760
      %2030 = vmatpush1.msra.mxu0 %v2029
      %v2031 = vand.u32 %v1394, 4294901760
      %2032 = vmatprep.subr.mxu0 %v2031
      %v2033 = vand.u32 %v1393, 4294901760
      %2034 = vmatpush1.msra.mxu0 %v2033
      %v2035 = vand.u32 %v1390, 4294901760
      %2036 = vmatprep.subr.mxu0 %v2035
      %v2037 = vand.u32 %v1389, 4294901760
      %2038 = vmatpush1.msra.mxu0 %v2037
      %v2039 = vand.u32 %v1386, 4294901760
      %2040 = vmatprep.subr.mxu0 %v2039
      %v2041 = vand.u32 %v1385, 4294901760
      %2042 = vmatpush1.msra.mxu0 %v2041
      %2043 = vmatprep.subr.mxu0 0.0
      %2044 = vmatpush2.msra.mxu0 0.0
      %2045 = vmatprep.subr.mxu0 0.0
      %2046 = vmatpush2.msra.mxu0 0.0
      %2047 = vmatprep.subr.mxu0 0.0
      %2048 = vmatpush2.msra.mxu0 0.0
      %2049 = vmatprep.subr.mxu0 0.0
      %2050 = vmatpush2.msra.mxu0 0.0
      %2051 = vmatprep.subr.mxu0 0.0
      %2052 = vmatpush2.msra.mxu0 0.0
      %2053 = vmatprep.subr.mxu0 0.0
      %2054 = vmatpush2.msra.mxu0 0.0
      %2055 = vmatprep.subr.mxu0 0.0
      %2056 = vmatpush2.msra.mxu0 0.0
      %2057 = vmatprep.subr.mxu0 0.0
      %2058 = vmatpush2.msra.mxu0 0.0
      %2059 = vmatprep.subr.mxu0 0.0
      %2060 = vmatpush2.msra.mxu0 0.0
      %2061 = vmatprep.subr.mxu0 0.0
      %2062 = vmatpush2.msra.mxu0 0.0
      %2063 = vmatprep.subr.mxu0 0.0
      %2064 = vmatpush2.msra.mxu0 0.0
      %2065 = vmatprep.subr.mxu0 0.0
      %2066 = vmatpush2.msra.mxu0 0.0
      %2067 = vmatprep.subr.mxu0 0.0
      %2068 = vmatpush2.msra.mxu0 0.0
      %2069 = vmatprep.subr.mxu0 0.0
      %2070 = vmatpush2.msra.mxu0 0.0
      %2071 = vmatprep.subr.mxu0 0.0
      %2072 = vmatpush2.msra.mxu0 0.0
      %2073 = vmatprep.subr.mxu0 0.0
      %2074 = vmatpush2.msra.mxu0 0.0
      %2075 = vmatprep.mubr.f32.mxu0 0.0
      %v2076 = vand.u32 %v172, 4294901760
      %v2077 = vsub.f32 %v172, %v2076
      %v2078 = vand.u32 %v2077, 4294901760
      %v2079 = vsub.f32 %v2077, %v2078
      %v2080 = vand.u32 %v2079, 4294901760
      %2081 = vmatmul.mubr.f32.gmra.mxu0 %v2080
      %v2082 = vpop.f32.mrf.mxu0
      %v2083 = vadd.f32 0.0, %v2082
      %v2084 = vpop.f32.mrf.mxu0
      %v2085 = vadd.f32 0.0, %v2084
      %2086 = vmatprep.mubr.f32.mxu0 0.0
      %v2087 = vand.u32 %v175, 4294901760
      %v2088 = vsub.f32 %v175, %v2087
      %v2089 = vand.u32 %v2088, 4294901760
      %v2090 = vsub.f32 %v2088, %v2089
      %v2091 = vand.u32 %v2090, 4294901760
      %2092 = vmatmul.mubr.f32.gmra.mxu0 %v2091
      %v2093 = vpop.f32.mrf.mxu0
      %v2094 = vadd.f32 0.0, %v2093
      %v2095 = vpop.f32.mrf.mxu0
      %v2096 = vadd.f32 0.0, %v2095
      %2097 = vdwg.mxu0
      %2098 = vmatprep.subr.mxu0 0.0
      %2099 = vmatpush1.msra.mxu0 0.0
      %2100 = vmatprep.subr.mxu0 0.0
      %2101 = vmatpush1.msra.mxu0 0.0
      %2102 = vmatprep.subr.mxu0 0.0
      %2103 = vmatpush1.msra.mxu0 0.0
      %2104 = vmatprep.subr.mxu0 0.0
      %2105 = vmatpush1.msra.mxu0 0.0
      %2106 = vmatprep.subr.mxu0 0.0
      %2107 = vmatpush1.msra.mxu0 0.0
      %2108 = vmatprep.subr.mxu0 0.0
      %2109 = vmatpush1.msra.mxu0 0.0
      %2110 = vmatprep.subr.mxu0 0.0
      %2111 = vmatpush1.msra.mxu0 0.0
      %2112 = vmatprep.subr.mxu0 0.0
      %2113 = vmatpush1.msra.mxu0 0.0
      %2114 = vmatprep.subr.mxu0 0.0
      %2115 = vmatpush1.msra.mxu0 0.0
      %2116 = vmatprep.subr.mxu0 0.0
      %2117 = vmatpush1.msra.mxu0 0.0
      %2118 = vmatprep.subr.mxu0 0.0
      %2119 = vmatpush1.msra.mxu0 0.0
      %2120 = vmatprep.subr.mxu0 0.0
      %2121 = vmatpush1.msra.mxu0 0.0
      %v2122 = vand.u32 %v1409, 4294901760
      %v2123 = vsub.f32 %v1409, %v2122
      %v2124 = vand.u32 %v2123, 4294901760
      %v2125 = vsub.f32 %v2123, %v2124
      %v2126 = vand.u32 %v2125, 4294901760
      %2127 = vmatprep.subr.mxu0 %v2126
      %v2128 = vand.u32 %v1406, 4294901760
      %v2129 = vsub.f32 %v1406, %v2128
      %v2130 = vand.u32 %v2129, 4294901760
      %v2131 = vsub.f32 %v2129, %v2130
      %v2132 = vand.u32 %v2131, 4294901760
      %2133 = vmatpush1.msra.mxu0 %v2132
      %v2134 = vand.u32 %v1394, 4294901760
      %v2135 = vsub.f32 %v1394, %v2134
      %v2136 = vand.u32 %v2135, 4294901760
      %v2137 = vsub.f32 %v2135, %v2136
      %v2138 = vand.u32 %v2137, 4294901760
      %2139 = vmatprep.subr.mxu0 %v2138
      %v2140 = vand.u32 %v1393, 4294901760
      %v2141 = vsub.f32 %v1393, %v2140
      %v2142 = vand.u32 %v2141, 4294901760
      %v2143 = vsub.f32 %v2141, %v2142
      %v2144 = vand.u32 %v2143, 4294901760
      %2145 = vmatpush1.msra.mxu0 %v2144
      %v2146 = vand.u32 %v1390, 4294901760
      %v2147 = vsub.f32 %v1390, %v2146
      %v2148 = vand.u32 %v2147, 4294901760
      %v2149 = vsub.f32 %v2147, %v2148
      %v2150 = vand.u32 %v2149, 4294901760
      %2151 = vmatprep.subr.mxu0 %v2150
      %v2152 = vand.u32 %v1389, 4294901760
      %v2153 = vsub.f32 %v1389, %v2152
      %v2154 = vand.u32 %v2153, 4294901760
      %v2155 = vsub.f32 %v2153, %v2154
      %v2156 = vand.u32 %v2155, 4294901760
      %2157 = vmatpush1.msra.mxu0 %v2156
      %v2158 = vand.u32 %v1386, 4294901760
      %v2159 = vsub.f32 %v1386, %v2158
      %v2160 = vand.u32 %v2159, 4294901760
      %v2161 = vsub.f32 %v2159, %v2160
      %v2162 = vand.u32 %v2161, 4294901760
      %2163 = vmatprep.subr.mxu0 %v2162
      %v2164 = vand.u32 %v1385, 4294901760
      %v2165 = vsub.f32 %v1385, %v2164
      %v2166 = vand.u32 %v2165, 4294901760
      %v2167 = vsub.f32 %v2165, %v2166
      %v2168 = vand.u32 %v2167, 4294901760
      %2169 = vmatpush1.msra.mxu0 %v2168
      %2170 = vmatprep.subr.mxu0 0.0
      %2171 = vmatpush2.msra.mxu0 0.0
      %2172 = vmatprep.subr.mxu0 0.0
      %2173 = vmatpush2.msra.mxu0 0.0
      %2174 = vmatprep.subr.mxu0 0.0
      %2175 = vmatpush2.msra.mxu0 0.0
      %2176 = vmatprep.subr.mxu0 0.0
      %2177 = vmatpush2.msra.mxu0 0.0
      %2178 = vmatprep.subr.mxu0 0.0
      %2179 = vmatpush2.msra.mxu0 0.0
      %2180 = vmatprep.subr.mxu0 0.0
      %2181 = vmatpush2.msra.mxu0 0.0
      %2182 = vmatprep.subr.mxu0 0.0
      %2183 = vmatpush2.msra.mxu0 0.0
      %2184 = vmatprep.subr.mxu0 0.0
      %2185 = vmatpush2.msra.mxu0 0.0
      %2186 = vmatprep.subr.mxu0 0.0
      %2187 = vmatpush2.msra.mxu0 0.0
      %2188 = vmatprep.subr.mxu0 0.0
      %2189 = vmatpush2.msra.mxu0 0.0
      %2190 = vmatprep.subr.mxu0 0.0
      %2191 = vmatpush2.msra.mxu0 0.0
      %2192 = vmatprep.subr.mxu0 0.0
      %2193 = vmatpush2.msra.mxu0 0.0
      %2194 = vmatprep.subr.mxu0 0.0
      %2195 = vmatpush2.msra.mxu0 0.0
      %2196 = vmatprep.subr.mxu0 0.0
      %2197 = vmatpush2.msra.mxu0 0.0
      %2198 = vmatprep.subr.mxu0 0.0
      %2199 = vmatpush2.msra.mxu0 0.0
      %2200 = vmatprep.subr.mxu0 0.0
      %2201 = vmatpush2.msra.mxu0 0.0
      %2202 = vmatprep.mubr.f32.mxu0 0.0
      %v2203 = vand.u32 %v172, 4294901760
      %2204 = vmatmul.mubr.f32.gmra.mxu0 %v2203
      %v2205 = vpop.f32.mrf.mxu0
      %v2206 = vadd.f32 %v2083, %v2205
      %v2207 = vpop.f32.mrf.mxu0
      %v2208 = vadd.f32 %v2085, %v2207
      %2209 = vmatprep.mubr.f32.mxu0 0.0
      %v2210 = vand.u32 %v175, 4294901760
      %2211 = vmatmul.mubr.f32.gmra.mxu0 %v2210
      %v2212 = vpop.f32.mrf.mxu0
      %v2213 = vadd.f32 %v2094, %v2212
      %v2214 = vpop.f32.mrf.mxu0
      %v2215 = vadd.f32 %v2096, %v2214
      %2216 = vdwg.mxu0
      %2217 = vmatprep.subr.mxu0 0.0
      %2218 = vmatpush1.msra.mxu0 0.0
      %2219 = vmatprep.subr.mxu0 0.0
      %2220 = vmatpush1.msra.mxu0 0.0
      %2221 = vmatprep.subr.mxu0 0.0
      %2222 = vmatpush1.msra.mxu0 0.0
      %2223 = vmatprep.subr.mxu0 0.0
      %2224 = vmatpush1.msra.mxu0 0.0
      %2225 = vmatprep.subr.mxu0 0.0
      %2226 = vmatpush1.msra.mxu0 0.0
      %2227 = vmatprep.subr.mxu0 0.0
      %2228 = vmatpush1.msra.mxu0 0.0
      %2229 = vmatprep.subr.mxu0 0.0
      %2230 = vmatpush1.msra.mxu0 0.0
      %2231 = vmatprep.subr.mxu0 0.0
      %2232 = vmatpush1.msra.mxu0 0.0
      %2233 = vmatprep.subr.mxu0 0.0
      %2234 = vmatpush1.msra.mxu0 0.0
      %2235 = vmatprep.subr.mxu0 0.0
      %2236 = vmatpush1.msra.mxu0 0.0
      %2237 = vmatprep.subr.mxu0 0.0
      %2238 = vmatpush1.msra.mxu0 0.0
      %2239 = vmatprep.subr.mxu0 0.0
      %2240 = vmatpush1.msra.mxu0 0.0
      %v2241 = vand.u32 %v1409, 4294901760
      %v2242 = vsub.f32 %v1409, %v2241
      %2243 = vmatprep.subr.mxu0 %v2242
      %v2244 = vand.u32 %v1406, 4294901760
      %v2245 = vsub.f32 %v1406, %v2244
      %2246 = vmatpush1.msra.mxu0 %v2245
      %v2247 = vand.u32 %v1394, 4294901760
      %v2248 = vsub.f32 %v1394, %v2247
      %2249 = vmatprep.subr.mxu0 %v2248
      %v2250 = vand.u32 %v1393, 4294901760
      %v2251 = vsub.f32 %v1393, %v2250
      %2252 = vmatpush1.msra.mxu0 %v2251
      %v2253 = vand.u32 %v1390, 4294901760
      %v2254 = vsub.f32 %v1390, %v2253
      %2255 = vmatprep.subr.mxu0 %v2254
      %v2256 = vand.u32 %v1389, 4294901760
      %v2257 = vsub.f32 %v1389, %v2256
      %2258 = vmatpush1.msra.mxu0 %v2257
      %v2259 = vand.u32 %v1386, 4294901760
      %v2260 = vsub.f32 %v1386, %v2259
      %2261 = vmatprep.subr.mxu0 %v2260
      %v2262 = vand.u32 %v1385, 4294901760
      %v2263 = vsub.f32 %v1385, %v2262
      %2264 = vmatpush1.msra.mxu0 %v2263
      %2265 = vmatprep.subr.mxu0 0.0
      %2266 = vmatpush2.msra.mxu0 0.0
      %2267 = vmatprep.subr.mxu0 0.0
      %2268 = vmatpush2.msra.mxu0 0.0
      %2269 = vmatprep.subr.mxu0 0.0
      %2270 = vmatpush2.msra.mxu0 0.0
      %2271 = vmatprep.subr.mxu0 0.0
      %2272 = vmatpush2.msra.mxu0 0.0
      %2273 = vmatprep.subr.mxu0 0.0
      %2274 = vmatpush2.msra.mxu0 0.0
      %2275 = vmatprep.subr.mxu0 0.0
      %2276 = vmatpush2.msra.mxu0 0.0
      %2277 = vmatprep.subr.mxu0 0.0
      %2278 = vmatpush2.msra.mxu0 0.0
      %2279 = vmatprep.subr.mxu0 0.0
      %2280 = vmatpush2.msra.mxu0 0.0
      %2281 = vmatprep.subr.mxu0 0.0
      %2282 = vmatpush2.msra.mxu0 0.0
      %2283 = vmatprep.subr.mxu0 0.0
      %2284 = vmatpush2.msra.mxu0 0.0
      %2285 = vmatprep.subr.mxu0 0.0
      %2286 = vmatpush2.msra.mxu0 0.0
      %2287 = vmatprep.subr.mxu0 0.0
      %2288 = vmatpush2.msra.mxu0 0.0
      %2289 = vmatprep.subr.mxu0 0.0
      %2290 = vmatpush2.msra.mxu0 0.0
      %2291 = vmatprep.subr.mxu0 0.0
      %2292 = vmatpush2.msra.mxu0 0.0
      %2293 = vmatprep.subr.mxu0 0.0
      %2294 = vmatpush2.msra.mxu0 0.0
      %2295 = vmatprep.subr.mxu0 0.0
      %2296 = vmatpush2.msra.mxu0 0.0
      %2297 = vmatprep.mubr.f32.mxu0 0.0
      %v2298 = vand.u32 %v172, 4294901760
      %v2299 = vsub.f32 %v172, %v2298
      %2300 = vmatmul.mubr.f32.gmra.mxu0 %v2299
      %v2301 = vpop.f32.mrf.mxu0
      %v2302 = vadd.f32 %v2206, %v2301
      %v2303 = vpop.f32.mrf.mxu0
      %v2304 = vadd.f32 %v2208, %v2303
      %2305 = vmatprep.mubr.f32.mxu0 0.0
      %v2306 = vand.u32 %v175, 4294901760
      %v2307 = vsub.f32 %v175, %v2306
      %2308 = vmatmul.mubr.f32.gmra.mxu0 %v2307
      %v2309 = vpop.f32.mrf.mxu0
      %v2310 = vadd.f32 %v2213, %v2309
      %v2311 = vpop.f32.mrf.mxu0
      %v2312 = vadd.f32 %v2215, %v2311
      %2313 = vdwg.mxu0
      %2314 = vmatprep.subr.mxu0 0.0
      %2315 = vmatpush1.msra.mxu0 0.0
      %2316 = vmatprep.subr.mxu0 0.0
      %2317 = vmatpush1.msra.mxu0 0.0
      %2318 = vmatprep.subr.mxu0 0.0
      %2319 = vmatpush1.msra.mxu0 0.0
      %2320 = vmatprep.subr.mxu0 0.0
      %2321 = vmatpush1.msra.mxu0 0.0
      %2322 = vmatprep.subr.mxu0 0.0
      %2323 = vmatpush1.msra.mxu0 0.0
      %2324 = vmatprep.subr.mxu0 0.0
      %2325 = vmatpush1.msra.mxu0 0.0
      %2326 = vmatprep.subr.mxu0 0.0
      %2327 = vmatpush1.msra.mxu0 0.0
      %2328 = vmatprep.subr.mxu0 0.0
      %2329 = vmatpush1.msra.mxu0 0.0
      %2330 = vmatprep.subr.mxu0 0.0
      %2331 = vmatpush1.msra.mxu0 0.0
      %2332 = vmatprep.subr.mxu0 0.0
      %2333 = vmatpush1.msra.mxu0 0.0
      %2334 = vmatprep.subr.mxu0 0.0
      %2335 = vmatpush1.msra.mxu0 0.0
      %2336 = vmatprep.subr.mxu0 0.0
      %2337 = vmatpush1.msra.mxu0 0.0
      %v2338 = vand.u32 %v1409, 4294901760
      %2339 = vmatprep.subr.mxu0 %v2338
      %v2340 = vand.u32 %v1406, 4294901760
      %2341 = vmatpush1.msra.mxu0 %v2340
      %v2342 = vand.u32 %v1394, 4294901760
      %2343 = vmatprep.subr.mxu0 %v2342
      %v2344 = vand.u32 %v1393, 4294901760
      %2345 = vmatpush1.msra.mxu0 %v2344
      %v2346 = vand.u32 %v1390, 4294901760
      %2347 = vmatprep.subr.mxu0 %v2346
      %v2348 = vand.u32 %v1389, 4294901760
      %2349 = vmatpush1.msra.mxu0 %v2348
      %v2350 = vand.u32 %v1386, 4294901760
      %2351 = vmatprep.subr.mxu0 %v2350
      %v2352 = vand.u32 %v1385, 4294901760
      %2353 = vmatpush1.msra.mxu0 %v2352
      %2354 = vmatprep.subr.mxu0 0.0
      %2355 = vmatpush2.msra.mxu0 0.0
      %2356 = vmatprep.subr.mxu0 0.0
      %2357 = vmatpush2.msra.mxu0 0.0
      %2358 = vmatprep.subr.mxu0 0.0
      %2359 = vmatpush2.msra.mxu0 0.0
      %2360 = vmatprep.subr.mxu0 0.0
      %2361 = vmatpush2.msra.mxu0 0.0
      %2362 = vmatprep.subr.mxu0 0.0
      %2363 = vmatpush2.msra.mxu0 0.0
      %2364 = vmatprep.subr.mxu0 0.0
      %2365 = vmatpush2.msra.mxu0 0.0
      %2366 = vmatprep.subr.mxu0 0.0
      %2367 = vmatpush2.msra.mxu0 0.0
      %2368 = vmatprep.subr.mxu0 0.0
      %2369 = vmatpush2.msra.mxu0 0.0
      %2370 = vmatprep.subr.mxu0 0.0
      %2371 = vmatpush2.msra.mxu0 0.0
      %2372 = vmatprep.subr.mxu0 0.0
      %2373 = vmatpush2.msra.mxu0 0.0
      %2374 = vmatprep.subr.mxu0 0.0
      %2375 = vmatpush2.msra.mxu0 0.0
      %2376 = vmatprep.subr.mxu0 0.0
      %2377 = vmatpush2.msra.mxu0 0.0
      %2378 = vmatprep.subr.mxu0 0.0
      %2379 = vmatpush2.msra.mxu0 0.0
      %2380 = vmatprep.subr.mxu0 0.0
      %2381 = vmatpush2.msra.mxu0 0.0
      %2382 = vmatprep.subr.mxu0 0.0
      %2383 = vmatpush2.msra.mxu0 0.0
      %2384 = vmatprep.subr.mxu0 0.0
      %2385 = vmatpush2.msra.mxu0 0.0
      %2386 = vmatprep.mubr.f32.mxu0 0.0
      %v2387 = vand.u32 %v172, 4294901760
      %v2388 = vsub.f32 %v172, %v2387
      %v2389 = vand.u32 %v2388, 4294901760
      %2390 = vmatmul.mubr.f32.gmra.mxu0 %v2389
      %v2391 = vpop.f32.mrf.mxu0
      %v2392 = vadd.f32 %v2302, %v2391
      %v2393 = vpop.f32.mrf.mxu0
      %v2394 = vadd.f32 %v2304, %v2393
      %2395 = vmatprep.mubr.f32.mxu0 0.0
      %v2396 = vand.u32 %v175, 4294901760
      %v2397 = vsub.f32 %v175, %v2396
      %v2398 = vand.u32 %v2397, 4294901760
      %2399 = vmatmul.mubr.f32.gmra.mxu0 %v2398
      %v2400 = vpop.f32.mrf.mxu0
      %v2401 = vadd.f32 %v2310, %v2400
      %v2402 = vpop.f32.mrf.mxu0
      %v2403 = vadd.f32 %v2312, %v2402
      %2404 = vdwg.mxu0
      %2405 = vmatprep.subr.mxu0 0.0
      %2406 = vmatpush1.msra.mxu0 0.0
      %2407 = vmatprep.subr.mxu0 0.0
      %2408 = vmatpush1.msra.mxu0 0.0
      %2409 = vmatprep.subr.mxu0 0.0
      %2410 = vmatpush1.msra.mxu0 0.0
      %2411 = vmatprep.subr.mxu0 0.0
      %2412 = vmatpush1.msra.mxu0 0.0
      %2413 = vmatprep.subr.mxu0 0.0
      %2414 = vmatpush1.msra.mxu0 0.0
      %2415 = vmatprep.subr.mxu0 0.0
      %2416 = vmatpush1.msra.mxu0 0.0
      %2417 = vmatprep.subr.mxu0 0.0
      %2418 = vmatpush1.msra.mxu0 0.0
      %2419 = vmatprep.subr.mxu0 0.0
      %2420 = vmatpush1.msra.mxu0 0.0
      %2421 = vmatprep.subr.mxu0 0.0
      %2422 = vmatpush1.msra.mxu0 0.0
      %2423 = vmatprep.subr.mxu0 0.0
      %2424 = vmatpush1.msra.mxu0 0.0
      %2425 = vmatprep.subr.mxu0 0.0
      %2426 = vmatpush1.msra.mxu0 0.0
      %2427 = vmatprep.subr.mxu0 0.0
      %2428 = vmatpush1.msra.mxu0 0.0
      %v2429 = vand.u32 %v1409, 4294901760
      %v2430 = vsub.f32 %v1409, %v2429
      %v2431 = vand.u32 %v2430, 4294901760
      %2432 = vmatprep.subr.mxu0 %v2431
      %v2433 = vand.u32 %v1406, 4294901760
      %v2434 = vsub.f32 %v1406, %v2433
      %v2435 = vand.u32 %v2434, 4294901760
      %2436 = vmatpush1.msra.mxu0 %v2435
      %v2437 = vand.u32 %v1394, 4294901760
      %v2438 = vsub.f32 %v1394, %v2437
      %v2439 = vand.u32 %v2438, 4294901760
      %2440 = vmatprep.subr.mxu0 %v2439
      %v2441 = vand.u32 %v1393, 4294901760
      %v2442 = vsub.f32 %v1393, %v2441
      %v2443 = vand.u32 %v2442, 4294901760
      %2444 = vmatpush1.msra.mxu0 %v2443
      %v2445 = vand.u32 %v1390, 4294901760
      %v2446 = vsub.f32 %v1390, %v2445
      %v2447 = vand.u32 %v2446, 4294901760
      %2448 = vmatprep.subr.mxu0 %v2447
      %v2449 = vand.u32 %v1389, 4294901760
      %v2450 = vsub.f32 %v1389, %v2449
      %v2451 = vand.u32 %v2450, 4294901760
      %2452 = vmatpush1.msra.mxu0 %v2451
      %v2453 = vand.u32 %v1386, 4294901760
      %v2454 = vsub.f32 %v1386, %v2453
      %v2455 = vand.u32 %v2454, 4294901760
      %2456 = vmatprep.subr.mxu0 %v2455
      %v2457 = vand.u32 %v1385, 4294901760
      %v2458 = vsub.f32 %v1385, %v2457
      %v2459 = vand.u32 %v2458, 4294901760
      %2460 = vmatpush1.msra.mxu0 %v2459
      %2461 = vmatprep.subr.mxu0 0.0
      %2462 = vmatpush2.msra.mxu0 0.0
      %2463 = vmatprep.subr.mxu0 0.0
      %2464 = vmatpush2.msra.mxu0 0.0
      %2465 = vmatprep.subr.mxu0 0.0
      %2466 = vmatpush2.msra.mxu0 0.0
      %2467 = vmatprep.subr.mxu0 0.0
      %2468 = vmatpush2.msra.mxu0 0.0
      %2469 = vmatprep.subr.mxu0 0.0
      %2470 = vmatpush2.msra.mxu0 0.0
      %2471 = vmatprep.subr.mxu0 0.0
      %2472 = vmatpush2.msra.mxu0 0.0
      %2473 = vmatprep.subr.mxu0 0.0
      %2474 = vmatpush2.msra.mxu0 0.0
      %2475 = vmatprep.subr.mxu0 0.0
      %2476 = vmatpush2.msra.mxu0 0.0
      %2477 = vmatprep.subr.mxu0 0.0
      %2478 = vmatpush2.msra.mxu0 0.0
      %2479 = vmatprep.subr.mxu0 0.0
      %2480 = vmatpush2.msra.mxu0 0.0
      %2481 = vmatprep.subr.mxu0 0.0
      %2482 = vmatpush2.msra.mxu0 0.0
      %2483 = vmatprep.subr.mxu0 0.0
      %2484 = vmatpush2.msra.mxu0 0.0
      %2485 = vmatprep.subr.mxu0 0.0
      %2486 = vmatpush2.msra.mxu0 0.0
      %2487 = vmatprep.subr.mxu0 0.0
      %2488 = vmatpush2.msra.mxu0 0.0
      %2489 = vmatprep.subr.mxu0 0.0
      %2490 = vmatpush2.msra.mxu0 0.0
      %2491 = vmatprep.subr.mxu0 0.0
      %2492 = vmatpush2.msra.mxu0 0.0
      %2493 = vmatprep.mubr.f32.mxu0 0.0
      %v2494 = vand.u32 %v172, 4294901760
      %2495 = vmatmul.mubr.f32.gmra.mxu0 %v2494
      %v2496 = vpop.f32.mrf.mxu0
      %v2497 = vadd.f32 %v2392, %v2496
      %v2498 = vpop.f32.mrf.mxu0
      %v2499 = vadd.f32 %v2394, %v2498
      %2500 = vmatprep.mubr.f32.mxu0 0.0
      %v2501 = vand.u32 %v175, 4294901760
      %2502 = vmatmul.mubr.f32.gmra.mxu0 %v2501
      %v2503 = vpop.f32.mrf.mxu0
      %v2504 = vadd.f32 %v2401, %v2503
      %v2505 = vpop.f32.mrf.mxu0
      %v2506 = vadd.f32 %v2403, %v2505
      %2507 = vdwg.mxu0
      %2508 = vmatprep.subr.mxu0 0.0
      %2509 = vmatpush1.msra.mxu0 0.0
      %2510 = vmatprep.subr.mxu0 0.0
      %2511 = vmatpush1.msra.mxu0 0.0
      %2512 = vmatprep.subr.mxu0 0.0
      %2513 = vmatpush1.msra.mxu0 0.0
      %2514 = vmatprep.subr.mxu0 0.0
      %2515 = vmatpush1.msra.mxu0 0.0
      %2516 = vmatprep.subr.mxu0 0.0
      %2517 = vmatpush1.msra.mxu0 0.0
      %2518 = vmatprep.subr.mxu0 0.0
      %2519 = vmatpush1.msra.mxu0 0.0
      %2520 = vmatprep.subr.mxu0 0.0
      %2521 = vmatpush1.msra.mxu0 0.0
      %2522 = vmatprep.subr.mxu0 0.0
      %2523 = vmatpush1.msra.mxu0 0.0
      %2524 = vmatprep.subr.mxu0 0.0
      %2525 = vmatpush1.msra.mxu0 0.0
      %2526 = vmatprep.subr.mxu0 0.0
      %2527 = vmatpush1.msra.mxu0 0.0
      %2528 = vmatprep.subr.mxu0 0.0
      %2529 = vmatpush1.msra.mxu0 0.0
      %2530 = vmatprep.subr.mxu0 0.0
      %2531 = vmatpush1.msra.mxu0 0.0
      %v2532 = vand.u32 %v1409, 4294901760
      %2533 = vmatprep.subr.mxu0 %v2532
      %v2534 = vand.u32 %v1406, 4294901760
      %2535 = vmatpush1.msra.mxu0 %v2534
      %v2536 = vand.u32 %v1394, 4294901760
      %2537 = vmatprep.subr.mxu0 %v2536
      %v2538 = vand.u32 %v1393, 4294901760
      %2539 = vmatpush1.msra.mxu0 %v2538
      %v2540 = vand.u32 %v1390, 4294901760
      %2541 = vmatprep.subr.mxu0 %v2540
      %v2542 = vand.u32 %v1389, 4294901760
      %2543 = vmatpush1.msra.mxu0 %v2542
      %v2544 = vand.u32 %v1386, 4294901760
      %2545 = vmatprep.subr.mxu0 %v2544
      %v2546 = vand.u32 %v1385, 4294901760
      %2547 = vmatpush1.msra.mxu0 %v2546
      %2548 = vmatprep.subr.mxu0 0.0
      %2549 = vmatpush2.msra.mxu0 0.0
      %2550 = vmatprep.subr.mxu0 0.0
      %2551 = vmatpush2.msra.mxu0 0.0
      %2552 = vmatprep.subr.mxu0 0.0
      %2553 = vmatpush2.msra.mxu0 0.0
      %2554 = vmatprep.subr.mxu0 0.0
      %2555 = vmatpush2.msra.mxu0 0.0
      %2556 = vmatprep.subr.mxu0 0.0
      %2557 = vmatpush2.msra.mxu0 0.0
      %2558 = vmatprep.subr.mxu0 0.0
      %2559 = vmatpush2.msra.mxu0 0.0
      %2560 = vmatprep.subr.mxu0 0.0
      %2561 = vmatpush2.msra.mxu0 0.0
      %2562 = vmatprep.subr.mxu0 0.0
      %2563 = vmatpush2.msra.mxu0 0.0
      %2564 = vmatprep.subr.mxu0 0.0
      %2565 = vmatpush2.msra.mxu0 0.0
      %2566 = vmatprep.subr.mxu0 0.0
      %2567 = vmatpush2.msra.mxu0 0.0
      %2568 = vmatprep.subr.mxu0 0.0
      %2569 = vmatpush2.msra.mxu0 0.0
      %2570 = vmatprep.subr.mxu0 0.0
      %2571 = vmatpush2.msra.mxu0 0.0
      %2572 = vmatprep.subr.mxu0 0.0
      %2573 = vmatpush2.msra.mxu0 0.0
      %2574 = vmatprep.subr.mxu0 0.0
      %2575 = vmatpush2.msra.mxu0 0.0
      %2576 = vmatprep.subr.mxu0 0.0
      %2577 = vmatpush2.msra.mxu0 0.0
      %2578 = vmatprep.subr.mxu0 0.0
      %2579 = vmatpush2.msra.mxu0 0.0
      %2580 = vmatprep.mubr.f32.mxu0 0.0
      %v2581 = vand.u32 %v172, 4294901760
      %2582 = vmatmul.mubr.f32.gmra.mxu0 %v2581
      %v2583 = vpop.f32.mrf.mxu0
      %v2584 = vadd.f32 %v2497, %v2583
      %v2585 = vpop.f32.mrf.mxu0
      %v2586 = vadd.f32 %v2499, %v2585
      %2587 = vmatprep.mubr.f32.mxu0 0.0
      %v2588 = vand.u32 %v175, 4294901760
      %2589 = vmatmul.mubr.f32.gmra.mxu0 %v2588
      %v2590 = vpop.f32.mrf.mxu0
      %v2591 = vadd.f32 %v2504, %v2590
      %v2592 = vpop.f32.mrf.mxu0
      %v2593 = vadd.f32 %v2506, %v2592
      %2594 = vdwg.mxu0
      %s2595 = scalar_lea.vmem %s150, 64
      %2596 = vst [vmem:[%s2595] sm:$0xff] %v1992
      %2597 = vst [vmem:[%s2595 + $0x8] sm:$0xff] %v1994
      %2598 = vst [vmem:[%s2595 + $0x10] sm:$0xff] %v2584
      %2599 = vst [vmem:[%s2595 + $0x18] sm:$0xff] %v2586
      %2600 = vst [vmem:[%s2595 + $0x20] sm:$0x7f] %v1999
      %2601 = vst [vmem:[%s2595 + $0x28] sm:$0x7f] %v2001
      %2602 = vst [vmem:[%s2595 + $0x30] sm:$0x7f] %v2591
      %2603 = vst [vmem:[%s2595 + $0x38] sm:$0x7f] %v2593
      %s2604 = smul.u32 2, %s13
      %p2605 = scmp.lt.s32.totalorder %s2604, 3
      %s2606 = scalar_select %p2605, %s2604, 3
      %s2607 = smul.addr %s2606, 8
      %s2608 = smul.addr %s2607, 8
      %s2609 = scalar_lea.vmem %s2, %s2608
      // Predicated region
      $region29: #{tpu_custom_call.1} parent=27 // pred_check
        %p2610 = pneg %p78
      $region30: #{tpu_custom_call.1} parent=27 // pred_check_branch
        %2612 = sbr.rel (%p2610) target = $region32
      $region31: #{tpu_custom_call.1} parent=27 // pred_region
        %s2613 = smul.u32 2, %s13
      $region32: #{tpu_custom_call.1} parent=27 // pred_fallthru
        _
    $region28: #{tpu_custom_call.1} parent=5 // pred_fallthru
      _
    %p2614 = scmp.le.s32.totalorder 2, %s8
    // Predicated region
    $region33: #{tpu_custom_call.1} parent=5 // pred_check
      %p2615 = pneg %p2614
    $region34: #{tpu_custom_call.1} parent=5 // pred_check_branch
      %2617 = sbr.rel (%p2615) target = $region36
    $region35: #{tpu_custom_call.1} parent=5 // pred_region
      %s2618 = ssub.s32 %s8, 2
      // Predicated region
      $region37: #{tpu_custom_call.1} parent=35 // pred_check
        %p2619 = pneg %p84
      $region38: #{tpu_custom_call.1} parent=35 // pred_check_branch
        %2621 = sbr.rel (%p2619) target = $region40
      $region39: #{tpu_custom_call.1} parent=35 // pred_region
        %s2622 = smul.u32 2, %s14
        %p2623 = scmp.lt.s32.totalorder %s2622, 3
        %s2624 = scalar_select %p2623, %s2622, 3
        %s2625 = smul.addr %s2624, 8
        %s2626 = smul.addr %s2625, 8
        %s2627 = scalar_lea.vmem %s2, %s2626
      $region40: #{tpu_custom_call.1} parent=35 // pred_fallthru
        _
    $region36: #{tpu_custom_call.1} parent=5 // pred_fallthru
      _
  $region6: #{tpu_custom_call.1} parent=0 // loop_footer
    %s12 = sadd.s32 1, %s8
  $region7: #{tpu_custom_call.1} parent=0 // loop_footer_branch
    %7 = sbr.rel target = $region3
  $region8: #{tpu_custom_call.1} parent=0 // loop_exit
    _

</llo_original>
